<compile_context>
chip_gen: v5e
topology: v5e:2x2
jax: 0.10.0
libtpu: 0.0.40
codegen_flags: <defaults>
</compile_context>

<pallas_src>
import functools

import numpy as np

import jax
import jax.numpy as jnp
from jax import lax
from jax.experimental import pallas as pl
from jax.experimental.pallas import tpu as pltpu


_BN_EPS = 1e-5
_WEIGHT_DTYPE = jnp.bfloat16      # MXU operand dtype (accumulation stays f32)


# --------------------------------------------------------------------------
# Fused SP kernel (one batch image per grid step)
# --------------------------------------------------------------------------
def _sp_kernel(x_ref,
               mA_ref, bA_ref,
               mB1_ref, bB1_ref, mB2_ref, bB2_ref, mB3_ref, bB3_ref,
               mC_ref, bC_ref,
               out_ref,
               padA_ref, padB1_ref, padB2_ref, padB3_ref, padC_ref,
               *, H, d1, d2, d3):
    f32 = jnp.float32
    cdt = mA_ref.dtype                     # bf16 (or f32 if flag flipped)
    WC2 = bB1_ref.shape[1]                 # W * channel2 lane width

    # ---- zero only the halo rows of each row-pad scratch (cheap; the
    # interior rows are fully overwritten every step).
    def zero_halo(pad_ref, p):
        z = jnp.zeros((p, pad_ref.shape[1]), f32)
        pad_ref[0:p, :] = z
        pad_ref[p + H:2 * p + H, :] = z

    zero_halo(padA_ref, 2)
    zero_halo(padB1_ref, d1)
    zero_halo(padB2_ref, d2)
    zero_halo(padB3_ref, d3)
    zero_halo(padC_ref, 1)

    def slab(pad_ref, ksize, dil):
        # kh-fused shifted-row slab: (H, ksize * width), cast once for the MXU.
        return jnp.concatenate(
            [pad_ref[kh * dil:kh * dil + H, :] for kh in range(ksize)],
            axis=1).astype(cdt)

    # ---- stage A: conv1 (1x1) | conv2 (3x3) | conv3 (5x5), all reading x,
    # fused along the output axis into ONE matmul (K = 5*W*C1, N = 3*W*C2).
    padA_ref[2:2 + H, :] = x_ref[0]
    yA = jnp.dot(slab(padA_ref, 5, 1), mA_ref[...], preferred_element_type=f32)
    yA = jnp.maximum(yA + bA_ref[...], 0.0)                    # (H, 3*WC2)

    # ---- stage B: the three dilated 3x3 convs, one matmul each (K = 3*W*C2).
    # Results go straight into the row-padded concat slab feeding conv_fuse
    # (the channel concat is just a lane offset).
    def dilated_branch(xb, pad_ref, dil, m_ref, b_ref, lane_off):
        pad_ref[dil:dil + H, :] = xb
        y = jnp.dot(slab(pad_ref, 3, dil), m_ref[...],
                    preferred_element_type=f32)
        y = jnp.maximum(y + b_ref[...], 0.0)
        padC_ref[1:1 + H, lane_off:lane_off + WC2] = y

    dilated_branch(yA[:, 0 * WC2:1 * WC2], padB1_ref, d1, mB1_ref, bB1_ref, 0 * WC2)
    dilated_branch(yA[:, 1 * WC2:2 * WC2], padB2_ref, d2, mB2_ref, bB2_ref, 1 * WC2)
    dilated_branch(yA[:, 2 * WC2:3 * WC2], padB3_ref, d3, mB3_ref, bB3_ref, 2 * WC2)

    # ---- stage C: conv_fuse over cat(x1d, x2d, x3d): ONE matmul, K = 3*3*W*C2.
    yC = jnp.dot(slab(padC_ref, 3, 1), mC_ref[...], preferred_element_type=f32)
    out_ref[0] = jnp.maximum(yC + bC_ref[...], 0.0)            # (H, W*C3)


# --------------------------------------------------------------------------
# SP forward wrapper
# --------------------------------------------------------------------------
def sp_forward(params, x_nchw):
    N, C1, H, W = x_nchw.shape
    C2 = params["channel2"]
    C3 = params["channel3"]
    d1, d2, d3 = params["dilations"]
    k = params["kernel"]

    WC1, WC2, WC3 = W * C1, W * C2, W * C3

    # NCHW -> lane-dense (N, H, W*C1)
    x2d = jnp.transpose(x_nchw, (0, 2, 3, 1)).reshape(N, H, WC1)

    weights = [k["mA"], k["bA"],
               k["mB1"], k["bB1"], k["mB2"], k["bB2"], k["mB3"], k["bB3"],
               k["mC"], k["bC"]]

    # Grid-invariant weights: whole-array resident in VMEM, single-buffered,
    # fetched once per call (amortized over the whole batch).
    weight_spec = pl.BlockSpec(memory_space=pltpu.MemorySpace.VMEM)
    in_specs = [pl.BlockSpec((1, H, WC1), lambda n: (n, 0, 0))] \
             + [weight_spec] * len(weights)

    kern = functools.partial(_sp_kernel, H=H, d1=d1, d2=d2, d3=d3)

    out2d = pl.pallas_call(
        kern,
        out_shape=jax.ShapeDtypeStruct((N, H, WC3), jnp.float32),
        grid=(N,),
        in_specs=in_specs,
        out_specs=pl.BlockSpec((1, H, WC3), lambda n: (n, 0, 0)),
        scratch_shapes=[
            pltpu.VMEM((H + 4, WC1), jnp.float32),        # x row-pad (pad=2)
            pltpu.VMEM((H + 2 * d1, WC2), jnp.float32),   # conv1_Dila row-pad
            pltpu.VMEM((H + 2 * d2, WC2), jnp.float32),   # conv2_Dila row-pad
            pltpu.VMEM((H + 2 * d3, WC2), jnp.float32),   # conv3_Dila row-pad
            pltpu.VMEM((H + 2, 3 * WC2), jnp.float32),    # [x1d|x2d|x3d] row-pad
        ],
        compiler_params=pltpu.CompilerParams(
            dimension_semantics=("parallel",)),
    )(x2d, *weights)

    return jnp.transpose(out2d.reshape(N, H, W, C3), (0, 3, 1, 2))


# --------------------------------------------------------------------------
# Parameter construction (deterministic, synthetic) + weight expansion
# --------------------------------------------------------------------------
def _make_basic_conv2d(key, in_planes, out_planes, kernel_size):
    kw_key, g_key, b_key = jax.random.split(key, 3)
    w_oihw = 0.1 * jax.random.normal(
        kw_key, (out_planes, in_planes, kernel_size, kernel_size), jnp.float32)
    gamma = 1.0 + 0.1 * jax.random.normal(g_key, (out_planes,), jnp.float32)
    beta = 0.1 * jax.random.normal(b_key, (out_planes,), jnp.float32)
    running_mean = jnp.zeros((out_planes,), jnp.float32)
    running_var = jnp.ones((out_planes,), jnp.float32)
    scale = gamma / jnp.sqrt(running_var + _BN_EPS)
    bias = beta - running_mean * scale
    return {"w_oihw": w_oihw, "scale": scale, "bias": bias}


def _expand_rowwise(w_oihw, scale, W_sp, pad, dil):
    """(K, W*Cin, W*Cout): folds kw taps, W-direction padding and BN scale."""
    w = np.asarray(w_oihw, np.float32)
    s = np.asarray(scale, np.float32)
    Cout, Cin, K, _ = w.shape
    wt = np.transpose(w, (2, 3, 1, 0)) * s[None, None, None, :]   # (K,K,Cin,Cout)
    M = np.zeros((K, W_sp * Cin, W_sp * Cout), np.float32)
    for kh in range(K):
        for kw in range(K):
            for wo in range(W_sp):
                wi = wo + kw * dil - pad
                if 0 <= wi < W_sp:
                    M[kh, wi * Cin:(wi + 1) * Cin,
                      wo * Cout:(wo + 1) * Cout] = wt[kh, kw]
    return M


def _bias_row(bias, W_sp):
    return np.tile(np.asarray(bias, np.float32), W_sp).reshape(1, -1)


def make_sp_params(key, channel1, channel2, channel3, W_sp,
                   dilation_1=2, dilation_2=4, dilation_3=8):
    keys = jax.random.split(key, 7)
    conv1 = _make_basic_conv2d(keys[0], channel1, channel2, 1)
    conv1_dila = _make_basic_conv2d(keys[1], channel2, channel2, 3)
    conv2 = _make_basic_conv2d(keys[2], channel1, channel2, 3)
    conv2_dila = _make_basic_conv2d(keys[3], channel2, channel2, 3)
    conv3 = _make_basic_conv2d(keys[4], channel1, channel2, 5)
    conv3_dila = _make_basic_conv2d(keys[5], channel2, channel2, 3)
    conv_fuse = _make_basic_conv2d(keys[6], channel2 * 3, channel3, 3)

    raw = {
        "conv1":      (conv1, dict(kernel_size=1, padding=0, dilation=1)),
        "conv1_dila": (conv1_dila, dict(kernel_size=3, padding=dilation_1,
                                        dilation=dilation_1)),
        "conv2":      (conv2, dict(kernel_size=3, padding=1, dilation=1)),
        "conv2_dila": (conv2_dila, dict(kernel_size=3, padding=dilation_2,
                                        dilation=dilation_2)),
        "conv3":      (conv3, dict(kernel_size=5, padding=2, dilation=1)),
        "conv3_dila": (conv3_dila, dict(kernel_size=3, padding=dilation_3,
                                        dilation=dilation_3)),
        "conv_fuse":  (conv_fuse, dict(kernel_size=3, padding=1, dilation=1)),
    }

    WC1 = W_sp * channel1
    WC2 = W_sp * channel2
    WC3 = W_sp * channel3

    # ---- stage A: conv1/conv2/conv3 share the input; fold them into one
    # (5*WC1, 3*WC2) weight operating on the kh-fused 5-tap slab of x padded
    # by 2 rows (conv1 sits at tap 2, conv2 at taps 1..3, conv3 at taps 0..4).
    E1 = _expand_rowwise(conv1["w_oihw"], conv1["scale"], W_sp, 0, 1)   # (1,..)
    E2 = _expand_rowwise(conv2["w_oihw"], conv2["scale"], W_sp, 1, 1)   # (3,..)
    E3 = _expand_rowwise(conv3["w_oihw"], conv3["scale"], W_sp, 2, 1)   # (5,..)
    MA = np.zeros((5 * WC1, 3 * WC2), np.float32)
    MA[2 * WC1:3 * WC1, 0:WC2] = E1[0]
    for kh in range(3):
        MA[(kh + 1) * WC1:(kh + 2) * WC1, WC2:2 * WC2] = E2[kh]
    for kh in range(5):
        MA[kh * WC1:(kh + 1) * WC1, 2 * WC2:3 * WC2] = E3[kh]
    bA = np.concatenate([_bias_row(conv1["bias"], W_sp),
                         _bias_row(conv2["bias"], W_sp),
                         _bias_row(conv3["bias"], W_sp)], axis=1)

    # ---- stage B: the three dilated convs, one kh-stacked (3*WC2, WC2) each.
    def stacked_dila(conv, dil):
        E = _expand_rowwise(conv["w_oihw"], conv["scale"], W_sp, dil, dil)
        return E.reshape(3 * WC2, WC2)

    MB1 = stacked_dila(conv1_dila, dilation_1)
    MB2 = stacked_dila(conv2_dila, dilation_2)
    MB3 = stacked_dila(conv3_dila, dilation_3)
    bB1 = _bias_row(conv1_dila["bias"], W_sp)
    bB2 = _bias_row(conv2_dila["bias"], W_sp)
    bB3 = _bias_row(conv3_dila["bias"], W_sp)

    # ---- stage C: conv_fuse over the lane-concatenated [x1d|x2d|x3d] slab,
    # kh-fused into a single (3*3*WC2, WC3) weight.
    wf = np.asarray(conv_fuse["w_oihw"], np.float32)
    MC = np.zeros((3 * 3 * WC2, WC3), np.float32)
    for b in range(3):
        Eb = _expand_rowwise(wf[:, b * channel2:(b + 1) * channel2],
                             conv_fuse["scale"], W_sp, 1, 1)     # (3, WC2, WC3)
        for kh in range(3):
            r = kh * 3 * WC2 + b * WC2
            MC[r:r + WC2, :] = Eb[kh]
    bC = _bias_row(conv_fuse["bias"], W_sp)

    wdt = _WEIGHT_DTYPE
    kernel_params = {
        "mA": jnp.asarray(MA, wdt),   "bA": jnp.asarray(bA, jnp.float32),
        "mB1": jnp.asarray(MB1, wdt), "bB1": jnp.asarray(bB1, jnp.float32),
        "mB2": jnp.asarray(MB2, wdt), "bB2": jnp.asarray(bB2, jnp.float32),
        "mB3": jnp.asarray(MB3, wdt), "bB3": jnp.asarray(bB3, jnp.float32),
        "mC": jnp.asarray(MC, wdt),   "bC": jnp.asarray(bC, jnp.float32),
    }

    return {
        "raw": raw,
        "kernel": kernel_params,
        "dilations": (dilation_1, dilation_2, dilation_3),
        "channel2": channel2,
        "channel3": channel3,
    }


# --------------------------------------------------------------------------
# Pure-JAX reference (for correctness check)
# --------------------------------------------------------------------------
def _ref_basic_conv(p, cfg, x_nchw):
    y = lax.conv_general_dilated(
        x_nchw, p["w_oihw"],
        window_strides=(1, 1),
        padding=[(cfg["padding"], cfg["padding"])] * 2,
        rhs_dilation=(cfg["dilation"], cfg["dilation"]),
        dimension_numbers=("NCHW", "OIHW", "NCHW"))
    scale = p["scale"].reshape(1, -1, 1, 1)
    bias = p["bias"].reshape(1, -1, 1, 1)
    return jnp.maximum(y * scale + bias, 0.0)


def sp_forward_ref(params, x_nchw):
    raw = params["raw"]
    x1 = _ref_basic_conv(*raw["conv1"], x_nchw)
    x1d = _ref_basic_conv(*raw["conv1_dila"], x1)
    x2 = _ref_basic_conv(*raw["conv2"], x_nchw)
    x2d = _ref_basic_conv(*raw["conv2_dila"], x2)
    x3 = _ref_basic_conv(*raw["conv3"], x_nchw)
    x3d = _ref_basic_conv(*raw["conv3_dila"], x3)
    cat = jnp.concatenate((x1d, x2d, x3d), axis=1)
    return _ref_basic_conv(*raw["conv_fuse"], cat)


# --------------------------------------------------------------------------
if __name__ == "__main__":
    key = jax.random.PRNGKey(0)
    k_x, k_p = jax.random.split(key)

    N, C1, H, W = 2, 4, 16, 16          # input: (2, 4, 16, 16) NCHW
    C2, C3 = 8, 8

    x = jax.random.normal(k_x, (N, C1, H, W), jnp.float32)
    params = make_sp_params(k_p, C1, C2, C3, W)

    out = jax.block_until_ready(sp_forward(params, x))
    assert out.shape == (N, C3, H, W), out.shape

    ref = jax.block_until_ready(sp_forward_ref(params, x))
    tol = 3e-2 if _WEIGHT_DTYPE == jnp.bfloat16 else 1e-3
    if not jnp.allclose(out, ref, rtol=tol, atol=tol):
        err = float(jnp.max(jnp.abs(out - ref)))
        raise AssertionError(
            f"Pallas SP output mismatch vs JAX reference (max abs err {err})")

    print("KERNEL_OK")
</pallas_src>

<mosaic_0001>
module attributes {stable_mosaic.version = 11 : i64} {
  func.func @_sp_kernel(%arg0: i32, %arg1: memref<1x16x64xf32, #tpu.memory_space<vmem>>, %arg2: memref<320x384xbf16, #tpu.memory_space<vmem>>, %arg3: memref<1x384xf32, #tpu.memory_space<vmem>>, %arg4: memref<384x128xbf16, #tpu.memory_space<vmem>>, %arg5: memref<1x128xf32, #tpu.memory_space<vmem>>, %arg6: memref<384x128xbf16, #tpu.memory_space<vmem>>, %arg7: memref<1x128xf32, #tpu.memory_space<vmem>>, %arg8: memref<384x128xbf16, #tpu.memory_space<vmem>>, %arg9: memref<1x128xf32, #tpu.memory_space<vmem>>, %arg10: memref<1152x128xbf16, #tpu.memory_space<vmem>>, %arg11: memref<1x128xf32, #tpu.memory_space<vmem>>, %arg12: memref<1x16x128xf32, #tpu.memory_space<vmem>>, %arg13: memref<20x64xf32, #tpu.memory_space<vmem>>, %arg14: memref<20x128xf32, #tpu.memory_space<vmem>>, %arg15: memref<24x128xf32, #tpu.memory_space<vmem>>, %arg16: memref<32x128xf32, #tpu.memory_space<vmem>>, %arg17: memref<18x384xf32, #tpu.memory_space<vmem>>) attributes {dimension_semantics = [#tpu.dimension_semantics<parallel>], iteration_bounds = array<i64: 2>, scalar_prefetch = 0 : i64, scratch_operands = 5 : i64, tpu.core_type = #tpu.core_type<tc>, window_params = [{transform_indices = @transform_0, window_bounds = array<i64: 1, 16, 64>}, {pipeline_mode = #tpu.pipeline_mode<synchronous>, transform_indices = @transform_1, window_bounds = array<i64: 320, 384>}, {pipeline_mode = #tpu.pipeline_mode<synchronous>, transform_indices = @transform_2, window_bounds = array<i64: 1, 384>}, {pipeline_mode = #tpu.pipeline_mode<synchronous>, transform_indices = @transform_3, window_bounds = array<i64: 384, 128>}, {pipeline_mode = #tpu.pipeline_mode<synchronous>, transform_indices = @transform_4, window_bounds = array<i64: 1, 128>}, {pipeline_mode = #tpu.pipeline_mode<synchronous>, transform_indices = @transform_5, window_bounds = array<i64: 384, 128>}, {pipeline_mode = #tpu.pipeline_mode<synchronous>, transform_indices = @transform_6, window_bounds = array<i64: 1, 128>}, {pipeline_mode = #tpu.pipeline_mode<synchronous>, transform_indices = @transform_7, window_bounds = array<i64: 384, 128>}, {pipeline_mode = #tpu.pipeline_mode<synchronous>, transform_indices = @transform_8, window_bounds = array<i64: 1, 128>}, {pipeline_mode = #tpu.pipeline_mode<synchronous>, transform_indices = @transform_9, window_bounds = array<i64: 1152, 128>}, {pipeline_mode = #tpu.pipeline_mode<synchronous>, transform_indices = @transform_10, window_bounds = array<i64: 1, 128>}, {transform_indices = @transform_11, window_bounds = array<i64: 1, 16, 128>}]} {
    %cst = arith.constant 0.000000e+00 : f32
    %0 = vector.broadcast %cst : f32 to vector<2x64xf32>
    %c0 = arith.constant 0 : index
    %c0_0 = arith.constant 0 : index
    %1 = vector.load %arg13[%c0, %c0_0] : memref<20x64xf32, #tpu.memory_space<vmem>>, vector<2x64xf32>
    tpu.vector_store %arg13[%c0, %c0_0], %0 {strides = array<i32>} : memref<20x64xf32, #tpu.memory_space<vmem>>, vector<2x64xf32>,
    %c18 = arith.constant 18 : index
    %c0_1 = arith.constant 0 : index
    %2 = vector.load %arg13[%c18, %c0_1] : memref<20x64xf32, #tpu.memory_space<vmem>>, vector<2x64xf32>
    tpu.vector_store %arg13[%c18, %c0_1], %0 {strides = array<i32>} : memref<20x64xf32, #tpu.memory_space<vmem>>, vector<2x64xf32>,
    %cst_2 = arith.constant 0.000000e+00 : f32
    %3 = vector.broadcast %cst_2 : f32 to vector<2x128xf32>
    %c0_3 = arith.constant 0 : index
    %c0_4 = arith.constant 0 : index
    %4 = vector.load %arg14[%c0_3, %c0_4] : memref<20x128xf32, #tpu.memory_space<vmem>>, vector<2x128xf32>
    tpu.vector_store %arg14[%c0_3, %c0_4], %3 {strides = array<i32>} : memref<20x128xf32, #tpu.memory_space<vmem>>, vector<2x128xf32>,
    %c18_5 = arith.constant 18 : index
    %c0_6 = arith.constant 0 : index
    %5 = vector.load %arg14[%c18_5, %c0_6] : memref<20x128xf32, #tpu.memory_space<vmem>>, vector<2x128xf32>
    tpu.vector_store %arg14[%c18_5, %c0_6], %3 {strides = array<i32>} : memref<20x128xf32, #tpu.memory_space<vmem>>, vector<2x128xf32>,
    %cst_7 = arith.constant 0.000000e+00 : f32
    %6 = vector.broadcast %cst_7 : f32 to vector<4x128xf32>
    %c0_8 = arith.constant 0 : index
    %c0_9 = arith.constant 0 : index
    %7 = vector.load %arg15[%c0_8, %c0_9] : memref<24x128xf32, #tpu.memory_space<vmem>>, vector<4x128xf32>
    tpu.vector_store %arg15[%c0_8, %c0_9], %6 {strides = array<i32>} : memref<24x128xf32, #tpu.memory_space<vmem>>, vector<4x128xf32>,
    %c20 = arith.constant 20 : index
    %c0_10 = arith.constant 0 : index
    %8 = vector.load %arg15[%c20, %c0_10] : memref<24x128xf32, #tpu.memory_space<vmem>>, vector<4x128xf32>
    tpu.vector_store %arg15[%c20, %c0_10], %6 {strides = array<i32>} : memref<24x128xf32, #tpu.memory_space<vmem>>, vector<4x128xf32>,
    %cst_11 = arith.constant 0.000000e+00 : f32
    %9 = vector.broadcast %cst_11 : f32 to vector<8x128xf32>
    %c0_12 = arith.constant 0 : index
    %c0_13 = arith.constant 0 : index
    %10 = vector.load %arg16[%c0_12, %c0_13] : memref<32x128xf32, #tpu.memory_space<vmem>>, vector<8x128xf32>
    tpu.vector_store %arg16[%c0_12, %c0_13], %9 {strides = array<i32>} : memref<32x128xf32, #tpu.memory_space<vmem>>, vector<8x128xf32>,
    %c24 = arith.constant 24 : index
    %c0_14 = arith.constant 0 : index
    %11 = vector.load %arg16[%c24, %c0_14] : memref<32x128xf32, #tpu.memory_space<vmem>>, vector<8x128xf32>
    tpu.vector_store %arg16[%c24, %c0_14], %9 {strides = array<i32>} : memref<32x128xf32, #tpu.memory_space<vmem>>, vector<8x128xf32>,
    %cst_15 = arith.constant 0.000000e+00 : f32
    %12 = vector.broadcast %cst_15 : f32 to vector<1x384xf32>
    %c0_16 = arith.constant 0 : index
    %c0_17 = arith.constant 0 : index
    %13 = vector.load %arg17[%c0_16, %c0_17] : memref<18x384xf32, #tpu.memory_space<vmem>>, vector<1x384xf32>
    tpu.vector_store %arg17[%c0_16, %c0_17], %12 {strides = array<i32>} : memref<18x384xf32, #tpu.memory_space<vmem>>, vector<1x384xf32>,
    %c17 = arith.constant 17 : index
    %c0_18 = arith.constant 0 : index
    %14 = vector.load %arg17[%c17, %c0_18] : memref<18x384xf32, #tpu.memory_space<vmem>>, vector<1x384xf32>
    tpu.vector_store %arg17[%c17, %c0_18], %12 {strides = array<i32>} : memref<18x384xf32, #tpu.memory_space<vmem>>, vector<1x384xf32>,
    %c0_19 = arith.constant 0 : index
    %c0_20 = arith.constant 0 : index
    %c0_21 = arith.constant 0 : index
    %15 = vector.load %arg1[%c0_19, %c0_20, %c0_21] : memref<1x16x64xf32, #tpu.memory_space<vmem>>, vector<1x16x64xf32>
    %16 = vector.shape_cast %15 : vector<1x16x64xf32> to vector<16x64xf32>
    %c2 = arith.constant 2 : index
    %c0_22 = arith.constant 0 : index
    %17 = vector.load %arg13[%c2, %c0_22] : memref<20x64xf32, #tpu.memory_space<vmem>>, vector<16x64xf32>
    tpu.vector_store %arg13[%c2, %c0_22], %16 {strides = array<i32>} : memref<20x64xf32, #tpu.memory_space<vmem>>, vector<16x64xf32>,
    %c0_23 = arith.constant 0 : index
    %c0_24 = arith.constant 0 : index
    %18 = vector.load %arg13[%c0_23, %c0_24] : memref<20x64xf32, #tpu.memory_space<vmem>>, vector<16x64xf32>
    %c1 = arith.constant 1 : index
    %c0_25 = arith.constant 0 : index
    %19 = vector.load %arg13[%c1, %c0_25] : memref<20x64xf32, #tpu.memory_space<vmem>>, vector<16x64xf32>
    %c2_26 = arith.constant 2 : index
    %c0_27 = arith.constant 0 : index
    %20 = vector.load %arg13[%c2_26, %c0_27] : memref<20x64xf32, #tpu.memory_space<vmem>>, vector<16x64xf32>
    %c3 = arith.constant 3 : index
    %c0_28 = arith.constant 0 : index
    %21 = vector.load %arg13[%c3, %c0_28] : memref<20x64xf32, #tpu.memory_space<vmem>>, vector<16x64xf32>
    %c4 = arith.constant 4 : index
    %c0_29 = arith.constant 0 : index
    %22 = vector.load %arg13[%c4, %c0_29] : memref<20x64xf32, #tpu.memory_space<vmem>>, vector<16x64xf32>
    %23 = tpu.concatenate %18, %19, %20, %21, %22 in 1 : vector<16x64xf32>, vector<16x64xf32>, vector<16x64xf32>, vector<16x64xf32>, vector<16x64xf32> -> vector<16x320xf32>
    %24 = arith.truncf %23 : vector<16x320xf32> to vector<16x320xbf16>
    %c0_30 = arith.constant 0 : index
    %c0_31 = arith.constant 0 : index
    %25 = vector.load %arg2[%c0_30, %c0_31] : memref<320x384xbf16, #tpu.memory_space<vmem>>, vector<320x384xbf16>
    %cst_32 = arith.constant dense<0.000000e+00> : vector<16x384xf32>
    %26 = tpu.matmul %24, %25, %cst_32 {dimension_numbers = #tpu.dot_dimension_numbers<[1], [0], [0], [1], [0, 0, 1, 1], [], []>} : vector<16x320xbf16>, vector<320x384xbf16>, vector<16x384xf32> -> vector<16x384xf32>
    %c0_33 = arith.constant 0 : index
    %c0_34 = arith.constant 0 : index
    %27 = vector.load %arg3[%c0_33, %c0_34] : memref<1x384xf32, #tpu.memory_space<vmem>>, vector<1x384xf32>
    %28 = vector.broadcast %27 : vector<1x384xf32> to vector<16x384xf32>
    %29 = arith.addf %26, %28 : vector<16x384xf32>
    %cst_35 = arith.constant 0.000000e+00 : f32
    %30 = vector.broadcast %cst_35 : f32 to vector<16x384xf32>
    %31 = arith.maximumf %29, %30 : vector<16x384xf32>
    %32 = vector.extract_strided_slice %31 {offsets = [0, 0], sizes = [16, 128], strides = [1, 1]} : vector<16x384xf32> to vector<16x128xf32>
    %c2_36 = arith.constant 2 : index
    %c0_37 = arith.constant 0 : index
    %33 = vector.load %arg14[%c2_36, %c0_37] : memref<20x128xf32, #tpu.memory_space<vmem>>, vector<16x128xf32>
    tpu.vector_store %arg14[%c2_36, %c0_37], %32 {strides = array<i32>} : memref<20x128xf32, #tpu.memory_space<vmem>>, vector<16x128xf32>,
    %c0_38 = arith.constant 0 : index
    %c0_39 = arith.constant 0 : index
    %34 = vector.load %arg14[%c0_38, %c0_39] : memref<20x128xf32, #tpu.memory_space<vmem>>, vector<16x128xf32>
    %c2_40 = arith.constant 2 : index
    %c0_41 = arith.constant 0 : index
    %35 = vector.load %arg14[%c2_40, %c0_41] : memref<20x128xf32, #tpu.memory_space<vmem>>, vector<16x128xf32>
    %c4_42 = arith.constant 4 : index
    %c0_43 = arith.constant 0 : index
    %36 = vector.load %arg14[%c4_42, %c0_43] : memref<20x128xf32, #tpu.memory_space<vmem>>, vector<16x128xf32>
    %37 = tpu.concatenate %34, %35, %36 in 1 : vector<16x128xf32>, vector<16x128xf32>, vector<16x128xf32> -> vector<16x384xf32>
    %38 = arith.truncf %37 : vector<16x384xf32> to vector<16x384xbf16>
    %c0_44 = arith.constant 0 : index
    %c0_45 = arith.constant 0 : index
    %39 = vector.load %arg4[%c0_44, %c0_45] : memref<384x128xbf16, #tpu.memory_space<vmem>>, vector<384x128xbf16>
    %cst_46 = arith.constant dense<0.000000e+00> : vector<16x128xf32>
    %40 = tpu.matmul %38, %39, %cst_46 {dimension_numbers = #tpu.dot_dimension_numbers<[1], [0], [0], [1], [0, 0, 1, 1], [], []>} : vector<16x384xbf16>, vector<384x128xbf16>, vector<16x128xf32> -> vector<16x128xf32>
    %c0_47 = arith.constant 0 : index
    %c0_48 = arith.constant 0 : index
    %41 = vector.load %arg5[%c0_47, %c0_48] : memref<1x128xf32, #tpu.memory_space<vmem>>, vector<1x128xf32>
    %42 = vector.broadcast %41 : vector<1x128xf32> to vector<16x128xf32>
    %43 = arith.addf %40, %42 : vector<16x128xf32>
    %cst_49 = arith.constant 0.000000e+00 : f32
    %44 = vector.broadcast %cst_49 : f32 to vector<16x128xf32>
    %45 = arith.maximumf %43, %44 : vector<16x128xf32>
    %c1_50 = arith.constant 1 : index
    %c0_51 = arith.constant 0 : index
    %46 = vector.load %arg17[%c1_50, %c0_51] : memref<18x384xf32, #tpu.memory_space<vmem>>, vector<16x128xf32>
    tpu.vector_store %arg17[%c1_50, %c0_51], %45 {strides = array<i32>} : memref<18x384xf32, #tpu.memory_space<vmem>>, vector<16x128xf32>,
    %47 = vector.extract_strided_slice %31 {offsets = [0, 128], sizes = [16, 128], strides = [1, 1]} : vector<16x384xf32> to vector<16x128xf32>
    %c4_52 = arith.constant 4 : index
    %c0_53 = arith.constant 0 : index
    %48 = vector.load %arg15[%c4_52, %c0_53] : memref<24x128xf32, #tpu.memory_space<vmem>>, vector<16x128xf32>
    tpu.vector_store %arg15[%c4_52, %c0_53], %47 {strides = array<i32>} : memref<24x128xf32, #tpu.memory_space<vmem>>, vector<16x128xf32>,
    %c0_54 = arith.constant 0 : index
    %c0_55 = arith.constant 0 : index
    %49 = vector.load %arg15[%c0_54, %c0_55] : memref<24x128xf32, #tpu.memory_space<vmem>>, vector<16x128xf32>
    %c4_56 = arith.constant 4 : index
    %c0_57 = arith.constant 0 : index
    %50 = vector.load %arg15[%c4_56, %c0_57] : memref<24x128xf32, #tpu.memory_space<vmem>>, vector<16x128xf32>
    %c8 = arith.constant 8 : index
    %c0_58 = arith.constant 0 : index
    %51 = vector.load %arg15[%c8, %c0_58] : memref<24x128xf32, #tpu.memory_space<vmem>>, vector<16x128xf32>
    %52 = tpu.concatenate %49, %50, %51 in 1 : vector<16x128xf32>, vector<16x128xf32>, vector<16x128xf32> -> vector<16x384xf32>
    %53 = arith.truncf %52 : vector<16x384xf32> to vector<16x384xbf16>
    %c0_59 = arith.constant 0 : index
    %c0_60 = arith.constant 0 : index
    %54 = vector.load %arg6[%c0_59, %c0_60] : memref<384x128xbf16, #tpu.memory_space<vmem>>, vector<384x128xbf16>
    %cst_61 = arith.constant dense<0.000000e+00> : vector<16x128xf32>
    %55 = tpu.matmul %53, %54, %cst_61 {dimension_numbers = #tpu.dot_dimension_numbers<[1], [0], [0], [1], [0, 0, 1, 1], [], []>} : vector<16x384xbf16>, vector<384x128xbf16>, vector<16x128xf32> -> vector<16x128xf32>
    %c0_62 = arith.constant 0 : index
    %c0_63 = arith.constant 0 : index
    %56 = vector.load %arg7[%c0_62, %c0_63] : memref<1x128xf32, #tpu.memory_space<vmem>>, vector<1x128xf32>
    %57 = vector.broadcast %56 : vector<1x128xf32> to vector<16x128xf32>
    %58 = arith.addf %55, %57 : vector<16x128xf32>
    %cst_64 = arith.constant 0.000000e+00 : f32
    %59 = vector.broadcast %cst_64 : f32 to vector<16x128xf32>
    %60 = arith.maximumf %58, %59 : vector<16x128xf32>
    %c1_65 = arith.constant 1 : index
    %c128 = arith.constant 128 : index
    %61 = vector.load %arg17[%c1_65, %c128] : memref<18x384xf32, #tpu.memory_space<vmem>>, vector<16x128xf32>
    tpu.vector_store %arg17[%c1_65, %c128], %60 {strides = array<i32>} : memref<18x384xf32, #tpu.memory_space<vmem>>, vector<16x128xf32>,
    %62 = vector.extract_strided_slice %31 {offsets = [0, 256], sizes = [16, 128], strides = [1, 1]} : vector<16x384xf32> to vector<16x128xf32>
    %c8_66 = arith.constant 8 : index
    %c0_67 = arith.constant 0 : index
    %63 = vector.load %arg16[%c8_66, %c0_67] : memref<32x128xf32, #tpu.memory_space<vmem>>, vector<16x128xf32>
    tpu.vector_store %arg16[%c8_66, %c0_67], %62 {strides = array<i32>} : memref<32x128xf32, #tpu.memory_space<vmem>>, vector<16x128xf32>,
    %c0_68 = arith.constant 0 : index
    %c0_69 = arith.constant 0 : index
    %64 = vector.load %arg16[%c0_68, %c0_69] : memref<32x128xf32, #tpu.memory_space<vmem>>, vector<16x128xf32>
    %c8_70 = arith.constant 8 : index
    %c0_71 = arith.constant 0 : index
    %65 = vector.load %arg16[%c8_70, %c0_71] : memref<32x128xf32, #tpu.memory_space<vmem>>, vector<16x128xf32>
    %c16 = arith.constant 16 : index
    %c0_72 = arith.constant 0 : index
    %66 = vector.load %arg16[%c16, %c0_72] : memref<32x128xf32, #tpu.memory_space<vmem>>, vector<16x128xf32>
    %67 = tpu.concatenate %64, %65, %66 in 1 : vector<16x128xf32>, vector<16x128xf32>, vector<16x128xf32> -> vector<16x384xf32>
    %68 = arith.truncf %67 : vector<16x384xf32> to vector<16x384xbf16>
    %c0_73 = arith.constant 0 : index
    %c0_74 = arith.constant 0 : index
    %69 = vector.load %arg8[%c0_73, %c0_74] : memref<384x128xbf16, #tpu.memory_space<vmem>>, vector<384x128xbf16>
    %cst_75 = arith.constant dense<0.000000e+00> : vector<16x128xf32>
    %70 = tpu.matmul %68, %69, %cst_75 {dimension_numbers = #tpu.dot_dimension_numbers<[1], [0], [0], [1], [0, 0, 1, 1], [], []>} : vector<16x384xbf16>, vector<384x128xbf16>, vector<16x128xf32> -> vector<16x128xf32>
    %c0_76 = arith.constant 0 : index
    %c0_77 = arith.constant 0 : index
    %71 = vector.load %arg9[%c0_76, %c0_77] : memref<1x128xf32, #tpu.memory_space<vmem>>, vector<1x128xf32>
    %72 = vector.broadcast %71 : vector<1x128xf32> to vector<16x128xf32>
    %73 = arith.addf %70, %72 : vector<16x128xf32>
    %cst_78 = arith.constant 0.000000e+00 : f32
    %74 = vector.broadcast %cst_78 : f32 to vector<16x128xf32>
    %75 = arith.maximumf %73, %74 : vector<16x128xf32>
    %c1_79 = arith.constant 1 : index
    %c256 = arith.constant 256 : index
    %76 = vector.load %arg17[%c1_79, %c256] : memref<18x384xf32, #tpu.memory_space<vmem>>, vector<16x128xf32>
    tpu.vector_store %arg17[%c1_79, %c256], %75 {strides = array<i32>} : memref<18x384xf32, #tpu.memory_space<vmem>>, vector<16x128xf32>,
    %c0_80 = arith.constant 0 : index
    %c0_81 = arith.constant 0 : index
    %77 = vector.load %arg17[%c0_80, %c0_81] : memref<18x384xf32, #tpu.memory_space<vmem>>, vector<16x384xf32>
    %c1_82 = arith.constant 1 : index
    %c0_83 = arith.constant 0 : index
    %78 = vector.load %arg17[%c1_82, %c0_83] : memref<18x384xf32, #tpu.memory_space<vmem>>, vector<16x384xf32>
    %c2_84 = arith.constant 2 : index
    %c0_85 = arith.constant 0 : index
    %79 = vector.load %arg17[%c2_84, %c0_85] : memref<18x384xf32, #tpu.memory_space<vmem>>, vector<16x384xf32>
    %80 = tpu.concatenate %77, %78, %79 in 1 : vector<16x384xf32>, vector<16x384xf32>, vector<16x384xf32> -> vector<16x1152xf32>
    %81 = arith.truncf %80 : vector<16x1152xf32> to vector<16x1152xbf16>
    %c0_86 = arith.constant 0 : index
    %c0_87 = arith.constant 0 : index
    %82 = vector.load %arg10[%c0_86, %c0_87] : memref<1152x128xbf16, #tpu.memory_space<vmem>>, vector<1152x128xbf16>
    %cst_88 = arith.constant dense<0.000000e+00> : vector<16x128xf32>
    %83 = tpu.matmul %81, %82, %cst_88 {dimension_numbers = #tpu.dot_dimension_numbers<[1], [0], [0], [1], [0, 0, 1, 1], [], []>} : vector<16x1152xbf16>, vector<1152x128xbf16>, vector<16x128xf32> -> vector<16x128xf32>
    %c0_89 = arith.constant 0 : index
    %c0_90 = arith.constant 0 : index
    %84 = vector.load %arg11[%c0_89, %c0_90] : memref<1x128xf32, #tpu.memory_space<vmem>>, vector<1x128xf32>
    %85 = vector.broadcast %84 : vector<1x128xf32> to vector<16x128xf32>
    %86 = arith.addf %83, %85 : vector<16x128xf32>
    %cst_91 = arith.constant 0.000000e+00 : f32
    %87 = vector.broadcast %cst_91 : f32 to vector<16x128xf32>
    %88 = arith.maximumf %86, %87 : vector<16x128xf32>
    %c0_92 = arith.constant 0 : index
    %c0_93 = arith.constant 0 : index
    %c0_94 = arith.constant 0 : index
    %89 = vector.load %arg12[%c0_92, %c0_93, %c0_94] : memref<1x16x128xf32, #tpu.memory_space<vmem>>, vector<1x16x128xf32>
    %90 = vector.shape_cast %89 : vector<1x16x128xf32> to vector<16x128xf32>
    %91 = vector.shape_cast %88 : vector<16x128xf32> to vector<1x16x128xf32>
    tpu.vector_store %arg12[%c0_92, %c0_93, %c0_94], %91 {strides = array<i32>} : memref<1x16x128xf32, #tpu.memory_space<vmem>>, vector<1x16x128xf32>,
    return
  }
  func.func @transform_0(%arg0: i32) -> (i32, i32, i32) {
    %c0_i32 = arith.constant 0 : i32
    %c0_i32_0 = arith.constant 0 : i32
    %c0_i32_1 = arith.constant 0 : i32
    return %arg0, %c0_i32, %c0_i32_0 : i32, i32, i32
  }
  func.func @transform_1(%arg0: i32) -> (i32, i32) {
    %c0_i32 = arith.constant 0 : i32
    %c0_i32_0 = arith.constant 0 : i32
    %c0_i32_1 = arith.constant 0 : i32
    return %c0_i32, %c0_i32_0 : i32, i32
  }
  func.func @transform_2(%arg0: i32) -> (i32, i32) {
    %c0_i32 = arith.constant 0 : i32
    %c0_i32_0 = arith.constant 0 : i32
    %c0_i32_1 = arith.constant 0 : i32
    return %c0_i32, %c0_i32_0 : i32, i32
  }
  func.func @transform_3(%arg0: i32) -> (i32, i32) {
    %c0_i32 = arith.constant 0 : i32
    %c0_i32_0 = arith.constant 0 : i32
    %c0_i32_1 = arith.constant 0 : i32
    return %c0_i32, %c0_i32_0 : i32, i32
  }
  func.func @transform_4(%arg0: i32) -> (i32, i32) {
    %c0_i32 = arith.constant 0 : i32
    %c0_i32_0 = arith.constant 0 : i32
    %c0_i32_1 = arith.constant 0 : i32
    return %c0_i32, %c0_i32_0 : i32, i32
  }
  func.func @transform_5(%arg0: i32) -> (i32, i32) {
    %c0_i32 = arith.constant 0 : i32
    %c0_i32_0 = arith.constant 0 : i32
    %c0_i32_1 = arith.constant 0 : i32
    return %c0_i32, %c0_i32_0 : i32, i32
  }
  func.func @transform_6(%arg0: i32) -> (i32, i32) {
    %c0_i32 = arith.constant 0 : i32
    %c0_i32_0 = arith.constant 0 : i32
    %c0_i32_1 = arith.constant 0 : i32
    return %c0_i32, %c0_i32_0 : i32, i32
  }
  func.func @transform_7(%arg0: i32) -> (i32, i32) {
    %c0_i32 = arith.constant 0 : i32
    %c0_i32_0 = arith.constant 0 : i32
    %c0_i32_1 = arith.constant 0 : i32
    return %c0_i32, %c0_i32_0 : i32, i32
  }
  func.func @transform_8(%arg0: i32) -> (i32, i32) {
    %c0_i32 = arith.constant 0 : i32
    %c0_i32_0 = arith.constant 0 : i32
    %c0_i32_1 = arith.constant 0 : i32
    return %c0_i32, %c0_i32_0 : i32, i32
  }
  func.func @transform_9(%arg0: i32) -> (i32, i32) {
    %c0_i32 = arith.constant 0 : i32
    %c0_i32_0 = arith.constant 0 : i32
    %c0_i32_1 = arith.constant 0 : i32
    return %c0_i32, %c0_i32_0 : i32, i32
  }
  func.func @transform_10(%arg0: i32) -> (i32, i32) {
    %c0_i32 = arith.constant 0 : i32
    %c0_i32_0 = arith.constant 0 : i32
    %c0_i32_1 = arith.constant 0 : i32
    return %c0_i32, %c0_i32_0 : i32, i32
  }
  func.func @transform_11(%arg0: i32) -> (i32, i32, i32) {
    %c0_i32 = arith.constant 0 : i32
    %c0_i32_0 = arith.constant 0 : i32
    %c0_i32_1 = arith.constant 0 : i32
    return %arg0, %c0_i32, %c0_i32_0 : i32, i32, i32
  }
}

</mosaic_0001>

<llo_original>
// kernel: tpu_custom_call.1
$region0: #{tpu_custom_call.1}
  #allocation0 [shape = 'u32[]', space=smem, size = 0x4, offset = 0x4, fixed_abs, tag = 'smem constant byte address 0x4 - core index']
  #allocation1 [shape = 'u32[72,128]{1,0:T(1,128)}', space=vmem, size = 0x9000, scoped, tag = 'internal scratch']
  #allocation2 [shape = 'f32[20,64]{1,0:T(8,128)}', space=vmem, size = 0x3000, scoped, tag = 'scratch operand']
  #allocation3 [shape = 'f32[20,128]{1,0:T(8,128)}', space=vmem, size = 0x3000, scoped, tag = 'scratch operand']
  #allocation4 [shape = 'f32[24,128]{1,0:T(8,128)}', space=vmem, size = 0x3000, scoped, tag = 'scratch operand']
  #allocation5 [shape = 'f32[32,128]{1,0:T(8,128)}', space=vmem, size = 0x4000, scoped, tag = 'scratch operand']
  #allocation6 [shape = 'f32[18,384]{1,0:T(8,128)}', space=vmem, size = 0x9000, scoped, tag = 'scratch operand']
  %s0 = inlined_call_operand.hbm [shape: f32[2,16,64], index: 0, kind: input, shape index: {}]
  %s1 = inlined_call_operand.hbm [shape: bf16[320,384], index: 1, kind: input, shape index: {}]
  %s2 = inlined_call_operand.hbm [shape: f32[1,384], index: 2, kind: input, shape index: {}]
  %s3 = inlined_call_operand.hbm [shape: bf16[384,128], index: 3, kind: input, shape index: {}]
  %s4 = inlined_call_operand.vmem [shape: f32[1,128], index: 4, kind: input, shape index: {}]
  %s5 = inlined_call_operand.hbm [shape: bf16[384,128], index: 5, kind: input, shape index: {}]
  %s6 = inlined_call_operand.vmem [shape: f32[1,128], index: 6, kind: input, shape index: {}]
  %s7 = inlined_call_operand.hbm [shape: bf16[384,128], index: 7, kind: input, shape index: {}]
  %s8 = inlined_call_operand.vmem [shape: f32[1,128], index: 8, kind: input, shape index: {}]
  %s9 = inlined_call_operand.hbm [shape: bf16[1152,128], index: 9, kind: input, shape index: {}]
  %s10 = inlined_call_operand.vmem [shape: f32[1,128], index: 10, kind: input, shape index: {}]
  %s11 = inlined_call_operand.hbm [shape: f32[2,16,128], index: 11, kind: output, shape index: {}]
  %s12 = sld [smem:[#allocation0]]
  $region105: #{tpu_custom_call.1} parent=0
    _
  %s14 = ssub.s32 1, %s12
  %s15 = scalar_select 0, %s14, %s12
  $region1: #{tpu_custom_call.1} parent=0
    #allocation7 [shape = 'u8[16384]{0}', space=vmem, size = 0x4000, scoped, tag = 'input window, operand 0']
    #allocation8 [shape = 's32[2]{0}', space=sflag, size = 0x8, scoped, tag = 'scoped memory for tpu_custom_call.1']
    #allocation9 [shape = 's32[2]{0}', space=sflag, size = 0x8, scoped, tag = 'scoped memory for tpu_custom_call.1']
    #allocation10 [shape = 'u8[245760]{0}', space=vmem, size = 0x3c000, scoped, tag = 'input window, operand 1, single buffered']
    #allocation11 [shape = 's32[1]{0}', space=sflag, size = 0x4, scoped, tag = 'scoped memory for tpu_custom_call.1']
    #allocation12 [shape = 'u8[1536]{0}', space=vmem, size = 0x800, scoped, tag = 'input window, operand 2, single buffered']
    #allocation13 [shape = 'u8[98304]{0}', space=vmem, size = 0x18000, scoped, tag = 'input window, operand 3, single buffered']
    #allocation14 [shape = 's32[1]{0}', space=sflag, size = 0x4, scoped, tag = 'scoped memory for tpu_custom_call.1']
    #allocation15 [shape = 'u8[98304]{0}', space=vmem, size = 0x18000, scoped, tag = 'input window, operand 5, single buffered']
    #allocation16 [shape = 'u8[98304]{0}', space=vmem, size = 0x18000, scoped, tag = 'input window, operand 7, single buffered']
    #allocation17 [shape = 's32[1]{0}', space=sflag, size = 0x4, scoped, tag = 'scoped memory for tpu_custom_call.1']
    #allocation18 [shape = 'u8[294912]{0}', space=vmem, size = 0x48000, scoped, tag = 'input window, operand 9, single buffered']
    #allocation19 [shape = 'u8[16384]{0}', space=vmem, size = 0x4000, scoped, tag = 'output window, operand 0']
    %16 = vsyncpa [#allocation8], 0
    %s17 = scalar_lea.sflag [#allocation8], 1
    %18 = vsyncpa %s17, 0
    %19 = vsyncpa [#allocation11], 0
    %20 = vsyncpa [#allocation14], 0
    %21 = vsyncpa [#allocation17], 0
    %22 = vsyncpa [#allocation9], 0
    %s23 = scalar_lea.sflag [#allocation9], 1
    %24 = vsyncpa %s23, 0
    loop: start=0, step=1, limit=4
    $region2: #{tpu_custom_call.1} parent=1 // loop_pre_header
      _
    $region3: #{tpu_custom_call.1} parent=1 // loop_header
      %s26 = sphi 0, %s30
      %p27 = scmp.ge.s32.totalorder %s26, 4
      %s36 = sphi 0, %s38
      %s39 = sphi 0, %s36
      %s40 = sphi 0, %s39
      %s56 = sphi 0, %s40
      %s60 = sphi 0, %s60
      %s62 = sphi 0, %s60
      %s63 = sphi 0, %s62
      %s77 = sphi 0, %s63
      %s81 = sphi 0, %s81
      %s83 = sphi 0, %s81
      %s84 = sphi 0, %s83
      %s98 = sphi 0, %s84
      %s102 = sphi 0, %s102
      %s104 = sphi 0, %s102
      %s105 = sphi 0, %s104
      %s119 = sphi 0, %s105
      %s123 = sphi 0, %s123
      %s125 = sphi 0, %s123
      %s126 = sphi 0, %s125
      %s140 = sphi 0, %s126
      %s144 = sphi 0, %s144
      %s146 = sphi 0, %s144
      %s147 = sphi 0, %s146
      %s161 = sphi 0, %s147
      %s165 = sphi 0, %s165
      %s167 = sphi 0, %s165
      %s168 = sphi 0, %s167
      %s182 = sphi 0, %s168
      %s186 = sphi 0, %s186
      %s188 = sphi 0, %s186
      %s189 = sphi 0, %s188
      %s203 = sphi 0, %s189
      %s207 = sphi 0, %s207
      %s209 = sphi 0, %s207
      %s210 = sphi 0, %s209
      %s224 = sphi 0, %s210
      %s228 = sphi 0, %s228
      %s230 = sphi 0, %s228
      %s231 = sphi 0, %s230
      %s245 = sphi 0, %s231
      %s249 = sphi 0, %s249
      %s251 = sphi 0, %s249
      %s252 = sphi 0, %s251
      %s266 = sphi 0, %s252
      %s272 = sphi 0, %s274
      %s275 = sphi 0, %s272
      %s276 = sphi 0, %s275
      %s292 = sphi 0, %s276
    $region4: #{tpu_custom_call.1} parent=1 // loop_header_branch
      %29 = sbr.rel (%p27) target = $region8
    $region5: #{tpu_custom_call.1} parent=1 // loop_body
      %s31 = ssub.s32 %s26, 1
      %s32 = ssub.s32 %s26, 2
      %s33 = sadd.s32 %s26, 1
      %s34 = ssub.s32 %s26, %s33
      %p35 = scmp.eq.s32.totalorder %s34, 0
      %s37 = sadd.s32 %s36, 1
      %s38 = scalar_select %p35, %s36, %s37
      %p41 = pneg %p35
      %p42 = scmp.eq.s32.totalorder %s26, 1
      %p43 = por %p41, %p42
      %p44 = scmp.ne.s32.totalorder %s36, %s39
      %p45 = scmp.eq.s32.totalorder %s26, 0
      %p46 = por %p44, %p45
      %p47 = scmp.ne.s32.totalorder %s36, %s39
      %p48 = scmp.eq.s32.totalorder %s31, 1
      %p49 = por %p47, %p48
      %p50 = scmp.ne.s32.totalorder %s39, %s40
      %p51 = scmp.eq.s32.totalorder %s31, 0
      %p52 = por %p50, %p51
      %p53 = scmp.ne.s32.totalorder %s39, %s40
      %p54 = scmp.eq.s32.totalorder %s32, 1
      %p55 = por %p53, %p54
      %p57 = scmp.ne.s32.totalorder %s40, %s56
      %p58 = scmp.eq.s32.totalorder %s32, 0
      %p59 = por %p57, %p58
      %s61 = sadd.s32 %s60, 1
      %p64 = scmp.eq.s32.totalorder %s26, 1
      %p65 = scmp.ne.s32.totalorder %s60, %s62
      %p66 = scmp.eq.s32.totalorder %s26, 0
      %p67 = por %p65, %p66
      %p68 = scmp.ne.s32.totalorder %s60, %s62
      %p69 = scmp.eq.s32.totalorder %s31, 1
      %p70 = por %p68, %p69
      %p71 = scmp.ne.s32.totalorder %s62, %s63
      %p72 = scmp.eq.s32.totalorder %s31, 0
      %p73 = por %p71, %p72
      %p74 = scmp.ne.s32.totalorder %s62, %s63
      %p75 = scmp.eq.s32.totalorder %s32, 1
      %p76 = por %p74, %p75
      %p78 = scmp.ne.s32.totalorder %s63, %s77
      %p79 = scmp.eq.s32.totalorder %s32, 0
      %p80 = por %p78, %p79
      %s82 = sadd.s32 %s81, 1
      %p85 = scmp.eq.s32.totalorder %s26, 1
      %p86 = scmp.ne.s32.totalorder %s81, %s83
      %p87 = scmp.eq.s32.totalorder %s26, 0
      %p88 = por %p86, %p87
      %p89 = scmp.ne.s32.totalorder %s81, %s83
      %p90 = scmp.eq.s32.totalorder %s31, 1
      %p91 = por %p89, %p90
      %p92 = scmp.ne.s32.totalorder %s83, %s84
      %p93 = scmp.eq.s32.totalorder %s31, 0
      %p94 = por %p92, %p93
      %p95 = scmp.ne.s32.totalorder %s83, %s84
      %p96 = scmp.eq.s32.totalorder %s32, 1
      %p97 = por %p95, %p96
      %p99 = scmp.ne.s32.totalorder %s84, %s98
      %p100 = scmp.eq.s32.totalorder %s32, 0
      %p101 = por %p99, %p100
      %s103 = sadd.s32 %s102, 1
      %p106 = scmp.eq.s32.totalorder %s26, 1
      %p107 = scmp.ne.s32.totalorder %s102, %s104
      %p108 = scmp.eq.s32.totalorder %s26, 0
      %p109 = por %p107, %p108
      %p110 = scmp.ne.s32.totalorder %s102, %s104
      %p111 = scmp.eq.s32.totalorder %s31, 1
      %p112 = por %p110, %p111
      %p113 = scmp.ne.s32.totalorder %s104, %s105
      %p114 = scmp.eq.s32.totalorder %s31, 0
      %p115 = por %p113, %p114
      %p116 = scmp.ne.s32.totalorder %s104, %s105
      %p117 = scmp.eq.s32.totalorder %s32, 1
      %p118 = por %p116, %p117
      %p120 = scmp.ne.s32.totalorder %s105, %s119
      %p121 = scmp.eq.s32.totalorder %s32, 0
      %p122 = por %p120, %p121
      %s124 = sadd.s32 %s123, 1
      %p127 = scmp.eq.s32.totalorder %s26, 1
      %p128 = scmp.ne.s32.totalorder %s123, %s125
      %p129 = scmp.eq.s32.totalorder %s26, 0
      %p130 = por %p128, %p129
      %p131 = scmp.ne.s32.totalorder %s123, %s125
      %p132 = scmp.eq.s32.totalorder %s31, 1
      %p133 = por %p131, %p132
      %p134 = scmp.ne.s32.totalorder %s125, %s126
      %p135 = scmp.eq.s32.totalorder %s31, 0
      %p136 = por %p134, %p135
      %p137 = scmp.ne.s32.totalorder %s125, %s126
      %p138 = scmp.eq.s32.totalorder %s32, 1
      %p139 = por %p137, %p138
      %p141 = scmp.ne.s32.totalorder %s126, %s140
      %p142 = scmp.eq.s32.totalorder %s32, 0
      %p143 = por %p141, %p142
      %s145 = sadd.s32 %s144, 1
      %p148 = scmp.eq.s32.totalorder %s26, 1
      %p149 = scmp.ne.s32.totalorder %s144, %s146
      %p150 = scmp.eq.s32.totalorder %s26, 0
      %p151 = por %p149, %p150
      %p152 = scmp.ne.s32.totalorder %s144, %s146
      %p153 = scmp.eq.s32.totalorder %s31, 1
      %p154 = por %p152, %p153
      %p155 = scmp.ne.s32.totalorder %s146, %s147
      %p156 = scmp.eq.s32.totalorder %s31, 0
      %p157 = por %p155, %p156
      %p158 = scmp.ne.s32.totalorder %s146, %s147
      %p159 = scmp.eq.s32.totalorder %s32, 1
      %p160 = por %p158, %p159
      %p162 = scmp.ne.s32.totalorder %s147, %s161
      %p163 = scmp.eq.s32.totalorder %s32, 0
      %p164 = por %p162, %p163
      %s166 = sadd.s32 %s165, 1
      %p169 = scmp.eq.s32.totalorder %s26, 1
      %p170 = scmp.ne.s32.totalorder %s165, %s167
      %p171 = scmp.eq.s32.totalorder %s26, 0
      %p172 = por %p170, %p171
      %p173 = scmp.ne.s32.totalorder %s165, %s167
      %p174 = scmp.eq.s32.totalorder %s31, 1
      %p175 = por %p173, %p174
      %p176 = scmp.ne.s32.totalorder %s167, %s168
      %p177 = scmp.eq.s32.totalorder %s31, 0
      %p178 = por %p176, %p177
      %p179 = scmp.ne.s32.totalorder %s167, %s168
      %p180 = scmp.eq.s32.totalorder %s32, 1
      %p181 = por %p179, %p180
      %p183 = scmp.ne.s32.totalorder %s168, %s182
      %p184 = scmp.eq.s32.totalorder %s32, 0
      %p185 = por %p183, %p184
      %s187 = sadd.s32 %s186, 1
      %p190 = scmp.eq.s32.totalorder %s26, 1
      %p191 = scmp.ne.s32.totalorder %s186, %s188
      %p192 = scmp.eq.s32.totalorder %s26, 0
      %p193 = por %p191, %p192
      %p194 = scmp.ne.s32.totalorder %s186, %s188
      %p195 = scmp.eq.s32.totalorder %s31, 1
      %p196 = por %p194, %p195
      %p197 = scmp.ne.s32.totalorder %s188, %s189
      %p198 = scmp.eq.s32.totalorder %s31, 0
      %p199 = por %p197, %p198
      %p200 = scmp.ne.s32.totalorder %s188, %s189
      %p201 = scmp.eq.s32.totalorder %s32, 1
      %p202 = por %p200, %p201
      %p204 = scmp.ne.s32.totalorder %s189, %s203
      %p205 = scmp.eq.s32.totalorder %s32, 0
      %p206 = por %p204, %p205
      %s208 = sadd.s32 %s207, 1
      %p211 = scmp.eq.s32.totalorder %s26, 1
      %p212 = scmp.ne.s32.totalorder %s207, %s209
      %p213 = scmp.eq.s32.totalorder %s26, 0
      %p214 = por %p212, %p213
      %p215 = scmp.ne.s32.totalorder %s207, %s209
      %p216 = scmp.eq.s32.totalorder %s31, 1
      %p217 = por %p215, %p216
      %p218 = scmp.ne.s32.totalorder %s209, %s210
      %p219 = scmp.eq.s32.totalorder %s31, 0
      %p220 = por %p218, %p219
      %p221 = scmp.ne.s32.totalorder %s209, %s210
      %p222 = scmp.eq.s32.totalorder %s32, 1
      %p223 = por %p221, %p222
      %p225 = scmp.ne.s32.totalorder %s210, %s224
      %p226 = scmp.eq.s32.totalorder %s32, 0
      %p227 = por %p225, %p226
      %s229 = sadd.s32 %s228, 1
      %p232 = scmp.eq.s32.totalorder %s26, 1
      %p233 = scmp.ne.s32.totalorder %s228, %s230
      %p234 = scmp.eq.s32.totalorder %s26, 0
      %p235 = por %p233, %p234
      %p236 = scmp.ne.s32.totalorder %s228, %s230
      %p237 = scmp.eq.s32.totalorder %s31, 1
      %p238 = por %p236, %p237
      %p239 = scmp.ne.s32.totalorder %s230, %s231
      %p240 = scmp.eq.s32.totalorder %s31, 0
      %p241 = por %p239, %p240
      %p242 = scmp.ne.s32.totalorder %s230, %s231
      %p243 = scmp.eq.s32.totalorder %s32, 1
      %p244 = por %p242, %p243
      %p246 = scmp.ne.s32.totalorder %s231, %s245
      %p247 = scmp.eq.s32.totalorder %s32, 0
      %p248 = por %p246, %p247
      %s250 = sadd.s32 %s249, 1
      %p253 = scmp.eq.s32.totalorder %s26, 1
      %p254 = scmp.ne.s32.totalorder %s249, %s251
      %p255 = scmp.eq.s32.totalorder %s26, 0
      %p256 = por %p254, %p255
      %p257 = scmp.ne.s32.totalorder %s249, %s251
      %p258 = scmp.eq.s32.totalorder %s31, 1
      %p259 = por %p257, %p258
      %p260 = scmp.ne.s32.totalorder %s251, %s252
      %p261 = scmp.eq.s32.totalorder %s31, 0
      %p262 = por %p260, %p261
      %p263 = scmp.ne.s32.totalorder %s251, %s252
      %p264 = scmp.eq.s32.totalorder %s32, 1
      %p265 = por %p263, %p264
      %p267 = scmp.ne.s32.totalorder %s252, %s266
      %p268 = scmp.eq.s32.totalorder %s32, 0
      %p269 = por %p267, %p268
      %s270 = ssub.s32 %s26, %s33
      %p271 = scmp.eq.s32.totalorder %s270, 0
      %s273 = sadd.s32 %s272, 1
      %s274 = scalar_select %p271, %s272, %s273
      %p277 = pneg %p271
      %p278 = scmp.eq.s32.totalorder %s26, 1
      %p279 = por %p277, %p278
      %p280 = scmp.ne.s32.totalorder %s272, %s275
      %p281 = scmp.eq.s32.totalorder %s26, 0
      %p282 = por %p280, %p281
      %p283 = scmp.ne.s32.totalorder %s272, %s275
      %p284 = scmp.eq.s32.totalorder %s31, 1
      %p285 = por %p283, %p284
      %p286 = scmp.ne.s32.totalorder %s275, %s276
      %p287 = scmp.eq.s32.totalorder %s31, 0
      %p288 = por %p286, %p287
      %p289 = scmp.ne.s32.totalorder %s275, %s276
      %p290 = scmp.eq.s32.totalorder %s32, 1
      %p291 = por %p289, %p290
      %p293 = scmp.ne.s32.totalorder %s276, %s292
      %p294 = scmp.eq.s32.totalorder %s32, 0
      %p295 = por %p293, %p294
      %p296 = scmp.le.s32.totalorder 1, %s26
      %p297 = scmp.lt.s32.totalorder %s26, 3
      %p298 = pnand %p296, %p297
      %p299 = pneg %p298
      // Predicated region
      $region9: #{tpu_custom_call.1} parent=5 // pred_check
        _
      $region10: #{tpu_custom_call.1} parent=5 // pred_check_branch
        %301 = sbr.rel (%p298) target = $region12
      $region11: #{tpu_custom_call.1} parent=5 // pred_region
        %s302 = ssub.s32 %s26, 1
        // Predicated region
        $region13: #{tpu_custom_call.1} parent=11 // pred_check
          %p303 = pneg %p73
        $region14: #{tpu_custom_call.1} parent=11 // pred_check_branch
          %305 = sbr.rel (%p303) target = $region16
        $region15: #{tpu_custom_call.1} parent=11 // pred_region
          %307 = vsyncadd [#allocation11], 0
          %s308 = sshll.u32 %s1, 4
          %s309 = int_to_ptr.hbm [resolvable:$true] %s308
          %s310 = sshll.u32 [#allocation10], 4
          %s311 = int_to_ptr.vmem [resolvable:$true] %s310
          %316 = dma.hbm_to_vmem [thread:$0]  %s309, 7680, %s311, [#allocation11], 192, 192, 12
        $region16: #{tpu_custom_call.1} parent=11 // pred_fallthru
          _
        // Predicated region
        $region17: #{tpu_custom_call.1} parent=11 // pred_check
          %p317 = pneg %p94
        $region18: #{tpu_custom_call.1} parent=11 // pred_check_branch
          %319 = sbr.rel (%p317) target = $region20
        $region19: #{tpu_custom_call.1} parent=11 // pred_region
          %321 = vsyncadd [#allocation11], 0
          %s323 = sshll.u32 %s2, 4
          %s324 = int_to_ptr.hbm [resolvable:$true] %s323
          %s325 = sshll.u32 [#allocation12], 4
          %s326 = int_to_ptr.vmem [resolvable:$true] %s325
          %328 = dma.hbm_to_vmem [thread:$0]  %s324, 48, %s326, [#allocation11]
        $region20: #{tpu_custom_call.1} parent=11 // pred_fallthru
          _
        // Predicated region
        $region21: #{tpu_custom_call.1} parent=11 // pred_check
          %p329 = pneg %p115
        $region22: #{tpu_custom_call.1} parent=11 // pred_check_branch
          %331 = sbr.rel (%p329) target = $region24
        $region23: #{tpu_custom_call.1} parent=11 // pred_region
          %333 = vsyncadd [#allocation14], 0
          %s334 = sshll.u32 %s3, 4
          %s335 = int_to_ptr.hbm [resolvable:$true] %s334
          %s336 = sshll.u32 [#allocation13], 4
          %s337 = int_to_ptr.vmem [resolvable:$true] %s336
          %342 = dma.hbm_to_vmem [thread:$0]  %s335, 3072, %s337, [#allocation14], 64, 64, 4
        $region24: #{tpu_custom_call.1} parent=11 // pred_fallthru
          _
        // Predicated region
        $region25: #{tpu_custom_call.1} parent=11 // pred_check
          %p343 = pneg %p136
        $region26: #{tpu_custom_call.1} parent=11 // pred_check_branch
          %345 = sbr.rel (%p343) target = $region28
        $region27: #{tpu_custom_call.1} parent=11 // pred_region
          _
        $region28: #{tpu_custom_call.1} parent=11 // pred_fallthru
          _
        // Predicated region
        $region29: #{tpu_custom_call.1} parent=11 // pred_check
          %p346 = pneg %p157
        $region30: #{tpu_custom_call.1} parent=11 // pred_check_branch
          %348 = sbr.rel (%p346) target = $region32
        $region31: #{tpu_custom_call.1} parent=11 // pred_region
          %350 = vsyncadd [#allocation14], 0
          %s351 = sshll.u32 %s5, 4
          %s352 = int_to_ptr.hbm [resolvable:$true] %s351
          %s353 = sshll.u32 [#allocation15], 4
          %s354 = int_to_ptr.vmem [resolvable:$true] %s353
          %359 = dma.hbm_to_vmem [thread:$0]  %s352, 3072, %s354, [#allocation14], 64, 64, 4
        $region32: #{tpu_custom_call.1} parent=11 // pred_fallthru
          _
        // Predicated region
        $region33: #{tpu_custom_call.1} parent=11 // pred_check
          %p360 = pneg %p178
        $region34: #{tpu_custom_call.1} parent=11 // pred_check_branch
          %362 = sbr.rel (%p360) target = $region36
        $region35: #{tpu_custom_call.1} parent=11 // pred_region
          _
        $region36: #{tpu_custom_call.1} parent=11 // pred_fallthru
          _
        // Predicated region
        $region37: #{tpu_custom_call.1} parent=11 // pred_check
          %p363 = pneg %p199
        $region38: #{tpu_custom_call.1} parent=11 // pred_check_branch
          %365 = sbr.rel (%p363) target = $region40
        $region39: #{tpu_custom_call.1} parent=11 // pred_region
          %367 = vsyncadd [#allocation17], 0
          %s368 = sshll.u32 %s7, 4
          %s369 = int_to_ptr.hbm [resolvable:$true] %s368
          %s370 = sshll.u32 [#allocation16], 4
          %s371 = int_to_ptr.vmem [resolvable:$true] %s370
          %376 = dma.hbm_to_vmem [thread:$0]  %s369, 3072, %s371, [#allocation17], 64, 64, 4
        $region40: #{tpu_custom_call.1} parent=11 // pred_fallthru
          _
        // Predicated region
        $region41: #{tpu_custom_call.1} parent=11 // pred_check
          %p377 = pneg %p220
        $region42: #{tpu_custom_call.1} parent=11 // pred_check_branch
          %379 = sbr.rel (%p377) target = $region44
        $region43: #{tpu_custom_call.1} parent=11 // pred_region
          _
        $region44: #{tpu_custom_call.1} parent=11 // pred_fallthru
          _
        // Predicated region
        $region45: #{tpu_custom_call.1} parent=11 // pred_check
          %p380 = pneg %p241
        $region46: #{tpu_custom_call.1} parent=11 // pred_check_branch
          %382 = sbr.rel (%p380) target = $region48
        $region47: #{tpu_custom_call.1} parent=11 // pred_region
          %384 = vsyncadd [#allocation17], 0
          %s385 = sshll.u32 %s9, 4
          %s386 = int_to_ptr.hbm [resolvable:$true] %s385
          %s387 = sshll.u32 [#allocation18], 4
          %s388 = int_to_ptr.vmem [resolvable:$true] %s387
          %393 = dma.hbm_to_vmem [thread:$0]  %s386, 9216, %s388, [#allocation17], 64, 64, 4
        $region48: #{tpu_custom_call.1} parent=11 // pred_fallthru
          _
        // Predicated region
        $region49: #{tpu_custom_call.1} parent=11 // pred_check
          %p394 = pneg %p262
        $region50: #{tpu_custom_call.1} parent=11 // pred_check_branch
          %396 = sbr.rel (%p394) target = $region52
        $region51: #{tpu_custom_call.1} parent=11 // pred_region
          _
        $region52: #{tpu_custom_call.1} parent=11 // pred_fallthru
          _
      $region12: #{tpu_custom_call.1} parent=5 // pred_fallthru
        _
      %p397 = scmp.lt.s32.totalorder %s26, 2
      // Predicated region
      $region53: #{tpu_custom_call.1} parent=5 // pred_check
        %p398 = pneg %p397
      $region54: #{tpu_custom_call.1} parent=5 // pred_check_branch
        %400 = sbr.rel (%p398) target = $region56
      $region55: #{tpu_custom_call.1} parent=5 // pred_region
        // Predicated region
        $region57: #{tpu_custom_call.1} parent=55 // pred_check
          %p401 = pneg %p46
        $region58: #{tpu_custom_call.1} parent=55 // pred_check_branch
          %403 = sbr.rel (%p401) target = $region60
        $region59: #{tpu_custom_call.1} parent=55 // pred_region
          %s404 = sand.u32 %s36, 1
          %s405 = scalar_lea.sflag [#allocation8], %s404
          %s406 = sand.u32 %s36, 1
          %s407 = smul.addr %s406, 16
          %s408 = scalar_lea.vmem [#allocation7], %s407
          %410 = vsyncadd %s405, 0
          %s411 = smul.addr %s26, 2
          %s412 = smul.addr %s411, 8
          %s413 = scalar_lea.hbm %s0, %s412
          %s414 = sshll.u32 %s413, 4
          %s415 = int_to_ptr.hbm [resolvable:$true] %s414
          %s416 = sshll.u32 %s408, 4
          %s417 = int_to_ptr.vmem [resolvable:$true] %s416
          %422 = dma.hbm_to_vmem [thread:$0]  %s415, 256, %s417, %s405, 128, 128, 8
        $region60: #{tpu_custom_call.1} parent=55 // pred_fallthru
          _
      $region56: #{tpu_custom_call.1} parent=5 // pred_fallthru
        _
      %p423 = scmp.le.s32.totalorder 1, %s26
      %p424 = scmp.lt.s32.totalorder %s26, 3
      %p425 = pnand %p423, %p424
      %p426 = pneg %p425
      // Predicated region
      $region61: #{tpu_custom_call.1} parent=5 // pred_check
        _
      $region62: #{tpu_custom_call.1} parent=5 // pred_check_branch
        %428 = sbr.rel (%p425) target = $region64
      $region63: #{tpu_custom_call.1} parent=5 // pred_region
        %s429 = ssub.s32 %s26, 1
        %s430 = sand.u32 %s39, 1
        %s431 = scalar_lea.sflag [#allocation8], %s430
        %s432 = sand.u32 %s39, 1
        %s433 = smul.addr %s432, 16
        %s434 = scalar_lea.vmem [#allocation7], %s433
        // Predicated region
        $region65: #{tpu_custom_call.1} parent=63 // pred_check
          %p435 = pneg %p52
        $region66: #{tpu_custom_call.1} parent=63 // pred_check_branch
          %437 = sbr.rel (%p435) target = $region68
        $region67: #{tpu_custom_call.1} parent=63 // pred_region
          %439 = dma.done %s431, 256
        $region68: #{tpu_custom_call.1} parent=63 // pred_fallthru
          _
        // Predicated region
        $region69: #{tpu_custom_call.1} parent=63 // pred_check
          %p440 = pneg %p73
        $region70: #{tpu_custom_call.1} parent=63 // pred_check_branch
          %442 = sbr.rel (%p440) target = $region72
        $region71: #{tpu_custom_call.1} parent=63 // pred_region
          %444 = dma.done [#allocation11], 7680
        $region72: #{tpu_custom_call.1} parent=63 // pred_fallthru
          _
        // Predicated region
        $region73: #{tpu_custom_call.1} parent=63 // pred_check
          %p445 = pneg %p94
        $region74: #{tpu_custom_call.1} parent=63 // pred_check_branch
          %447 = sbr.rel (%p445) target = $region76
        $region75: #{tpu_custom_call.1} parent=63 // pred_region
          %449 = dma.done [#allocation11], 48
        $region76: #{tpu_custom_call.1} parent=63 // pred_fallthru
          _
        // Predicated region
        $region77: #{tpu_custom_call.1} parent=63 // pred_check
          %p450 = pneg %p115
        $region78: #{tpu_custom_call.1} parent=63 // pred_check_branch
          %452 = sbr.rel (%p450) target = $region80
        $region79: #{tpu_custom_call.1} parent=63 // pred_region
          %454 = dma.done [#allocation14], 3072
        $region80: #{tpu_custom_call.1} parent=63 // pred_fallthru
          _
        // Predicated region
        $region81: #{tpu_custom_call.1} parent=63 // pred_check
          %p455 = pneg %p157
        $region82: #{tpu_custom_call.1} parent=63 // pred_check_branch
          %457 = sbr.rel (%p455) target = $region84
        $region83: #{tpu_custom_call.1} parent=63 // pred_region
          %459 = dma.done [#allocation14], 3072
        $region84: #{tpu_custom_call.1} parent=63 // pred_fallthru
          _
        // Predicated region
        $region85: #{tpu_custom_call.1} parent=63 // pred_check
          %p460 = pneg %p199
        $region86: #{tpu_custom_call.1} parent=63 // pred_check_branch
          %462 = sbr.rel (%p460) target = $region88
        $region87: #{tpu_custom_call.1} parent=63 // pred_region
          %464 = dma.done [#allocation17], 3072
        $region88: #{tpu_custom_call.1} parent=63 // pred_fallthru
          _
        // Predicated region
        $region89: #{tpu_custom_call.1} parent=63 // pred_check
          %p465 = pneg %p241
        $region90: #{tpu_custom_call.1} parent=63 // pred_check_branch
          %467 = sbr.rel (%p465) target = $region92
        $region91: #{tpu_custom_call.1} parent=63 // pred_region
          %469 = dma.done [#allocation17], 9216
        $region92: #{tpu_custom_call.1} parent=63 // pred_fallthru
          _
        %s470 = sand.u32 %s39, 1
        %s471 = scalar_lea.sflag [#allocation8], %s470
        %s472 = sand.u32 %s39, 1
        %s473 = smul.addr %s472, 16
        %s474 = scalar_lea.vmem [#allocation7], %s473
        %p475 = pneg %p52
        %p476 = pneg %p49
        %p477 = pneg %p73
        %p478 = pneg %p70
        %p479 = pneg %p94
        %p480 = pneg %p91
        %p481 = pneg %p115
        %p482 = pneg %p112
        %p483 = pneg %p136
        %p484 = pneg %p133
        %p485 = pneg %p157
        %p486 = pneg %p154
        %p487 = pneg %p178
        %p488 = pneg %p175
        %p489 = pneg %p199
        %p490 = pneg %p196
        %p491 = pneg %p220
        %p492 = pneg %p217
        %p493 = pneg %p241
        %p494 = pneg %p238
        %p495 = pneg %p262
        %p496 = pneg %p259
        %p497 = pneg %p288
        %p498 = pneg %p285
        %s499 = sand.u32 %s275, 1
        %s500 = scalar_lea.sflag [#allocation9], %s499
        %s501 = sand.u32 %s275, 1
        %s502 = smul.addr %s501, 16
        %s503 = scalar_lea.vmem [#allocation19], %s502
        %vm505 = vcmask 517120
        %506 = vst.msk [vmem:[#allocation2] sm:$0x3] %vm505, 0.0
        %507 = vst.msk [vmem:[#allocation2 + $0x12] sm:$0x3] %vm505, 0.0
        %508 = vst [vmem:[#allocation3] sm:$0x3] 0.0
        %509 = vst [vmem:[#allocation3 + $0x12] sm:$0x3] 0.0
        %510 = vst [vmem:[#allocation4] sm:$0xf] 0.0
        %511 = vst [vmem:[#allocation4 + $0x14] sm:$0xf] 0.0
        %512 = vst [vmem:[#allocation5] sm:$0xff] 0.0
        %513 = vst [vmem:[#allocation5 + $0x18] sm:$0xff] 0.0
        %v514 = vlaneseq
        %vm515 = vcmp.ge.s32.totalorder %v514, 0
        %vm516 = vcmp.lt.s32.totalorder %v514, 384
        %vm517 = vmand %vm515, %vm516
        %518 = vst.msk [vmem:[#allocation6] ss:$8 sm:$0x7] %vm517, 0.0
        %519 = vst.msk [vmem:[#allocation6] ss:$8 sm:$0x0] %vm517, 0.0
        %s520 = scalar_lea.vmem [#allocation6], 49
        %521 = vst.msk [vmem:[%s520] ss:$8 sm:$0x7] %vm517, 0.0
        %522 = vst.msk [vmem:[%s520] ss:$8 sm:$0x0] %vm517, 0.0
        %v523 = vld [vmem:[%s434] sm:$0xff]
        %v524 = vld [vmem:[%s434 + $0x8] sm:$0xff]
        %vm525 = vcmask 523264
        %526 = vst.msk [vmem:[#allocation2 + $0x2] sm:$0xff] %vm525, %v523
        %527 = vst.msk [vmem:[#allocation2 + $0xa] sm:$0xff] %vm525, %v524
        %v528 = vld [vmem:[#allocation2] sm:$0xff]
        %v529 = vld [vmem:[#allocation2 + $0x8] sm:$0xff]
        %v530 = vld [vmem:[#allocation2 + $0x1] sm:$0xff]
        %v531 = vld [vmem:[#allocation2 + $0x9] sm:$0xff]
        %v532 = vld [vmem:[#allocation2 + $0x2] sm:$0xff]
        %v533 = vld [vmem:[#allocation2 + $0xa] sm:$0xff]
        %v534 = vld [vmem:[#allocation2 + $0x3] sm:$0xff]
        %v535 = vld [vmem:[#allocation2 + $0xb] sm:$0xff]
        %v536 = vld [vmem:[#allocation2 + $0x4] sm:$0xff]
        %v537 = vld [vmem:[#allocation2 + $0xc] sm:$0xff]
        %540 = vrot.lane.b32.xlu0 %v530, 64
        %v541 = vpop.permute.xlu0 %540
        %542 = vrot.lane.b32.xlu0 %v531, 64
        %v543 = vpop.permute.xlu0 %542
        %548 = vrot.lane.b32.xlu0 %v534, 64
        %v549 = vpop.permute.xlu0 %548
        %550 = vrot.lane.b32.xlu0 %v535, 64
        %v551 = vpop.permute.xlu0 %550
        %v554 = vsel %vm525, %v528, %v541
        %v555 = vsel %vm525, %v529, %v543
        %v556 = vsel %vm525, %v532, %v549
        %v557 = vsel %vm525, %v533, %v551
        %v558 = vpack.c.bf16 %v555, %v554
        %v559 = vpack.c.bf16 %v557, %v556
        %v560 = vpack.c.bf16 %v537, %v536
        %v561 = vld [vmem:[#allocation10] sm:$0xff]
        %v562 = vld [vmem:[#allocation10 + $0x8] sm:$0xf]
        %v563 = vld [vmem:[#allocation10 + $0xc] sm:$0xff]
        %v564 = vld [vmem:[#allocation10 + $0x14] sm:$0xf]
        %v565 = vld [vmem:[#allocation10 + $0x18] sm:$0xff]
        %v566 = vld [vmem:[#allocation10 + $0x20] sm:$0xf]
        %v567 = vld [vmem:[#allocation10 + $0x24] sm:$0xff]
        %v568 = vld [vmem:[#allocation10 + $0x2c] sm:$0xf]
        %v569 = vld [vmem:[#allocation10 + $0x30] sm:$0xff]
        %v570 = vld [vmem:[#allocation10 + $0x38] sm:$0xf]
        %v571 = vld [vmem:[#allocation10 + $0x3c] sm:$0xff]
        %v572 = vld [vmem:[#allocation10 + $0x44] sm:$0xf]
        %v573 = vld [vmem:[#allocation10 + $0x48] sm:$0xff]
        %v574 = vld [vmem:[#allocation10 + $0x50] sm:$0xf]
        %v575 = vld [vmem:[#allocation10 + $0x54] sm:$0xff]
        %v576 = vld [vmem:[#allocation10 + $0x5c] sm:$0xf]
        %v577 = vld [vmem:[#allocation10 + $0x60] sm:$0xff]
        %v578 = vld [vmem:[#allocation10 + $0x68] sm:$0xf]
        %v579 = vld [vmem:[#allocation10 + $0x6c] sm:$0xff]
        %v580 = vld [vmem:[#allocation10 + $0x74] sm:$0xf]
        %v581 = vld [vmem:[#allocation10 + $0x78] sm:$0xff]
        %v582 = vld [vmem:[#allocation10 + $0x80] sm:$0xf]
        %v583 = vld [vmem:[#allocation10 + $0x84] sm:$0xff]
        %v584 = vld [vmem:[#allocation10 + $0x8c] sm:$0xf]
        %v585 = vld [vmem:[#allocation10 + $0x90] sm:$0xff]
        %v586 = vld [vmem:[#allocation10 + $0x98] sm:$0xf]
        %v587 = vld [vmem:[#allocation10 + $0x9c] sm:$0xff]
        %v588 = vld [vmem:[#allocation10 + $0xa4] sm:$0xf]
        %v589 = vld [vmem:[#allocation10 + $0xa8] sm:$0xff]
        %v590 = vld [vmem:[#allocation10 + $0xb0] sm:$0xf]
        %v591 = vld [vmem:[#allocation10 + $0xb4] sm:$0xff]
        %v592 = vld [vmem:[#allocation10 + $0xbc] sm:$0xf]
        %v593 = vld [vmem:[#allocation10 + $0xc0] sm:$0xff]
        %v594 = vld [vmem:[#allocation10 + $0xc8] sm:$0xf]
        %v595 = vld [vmem:[#allocation10 + $0xcc] sm:$0xff]
        %v596 = vld [vmem:[#allocation10 + $0xd4] sm:$0xf]
        %v597 = vld [vmem:[#allocation10 + $0xd8] sm:$0xff]
        %v598 = vld [vmem:[#allocation10 + $0xe0] sm:$0xf]
        %v599 = vld [vmem:[#allocation10 + $0xe4] sm:$0xff]
        %v600 = vld [vmem:[#allocation10 + $0xec] sm:$0xf]
        %v601 = vld [vmem:[#allocation10 + $0xf0] sm:$0xff]
        %v602 = vld [vmem:[#allocation10 + $0xf8] sm:$0xf]
        %v603 = vld [vmem:[#allocation10 + $0xfc] sm:$0xff]
        %v604 = vld [vmem:[#allocation10 + $0x104] sm:$0xf]
        %v605 = vld [vmem:[#allocation10 + $0x108] sm:$0xff]
        %v606 = vld [vmem:[#allocation10 + $0x110] sm:$0xf]
        %v607 = vld [vmem:[#allocation10 + $0x114] sm:$0xff]
        %v608 = vld [vmem:[#allocation10 + $0x11c] sm:$0xf]
        %v609 = vld [vmem:[#allocation10 + $0x120] sm:$0xff]
        %v610 = vld [vmem:[#allocation10 + $0x128] sm:$0xf]
        %v611 = vld [vmem:[#allocation10 + $0x12c] sm:$0xff]
        %v612 = vld [vmem:[#allocation10 + $0x134] sm:$0xf]
        %v613 = vld [vmem:[#allocation10 + $0x138] sm:$0xff]
        %v614 = vld [vmem:[#allocation10 + $0x140] sm:$0xf]
        %v615 = vld [vmem:[#allocation10 + $0x144] sm:$0xff]
        %v616 = vld [vmem:[#allocation10 + $0x14c] sm:$0xf]
        %v617 = vld [vmem:[#allocation10 + $0x150] sm:$0xff]
        %v618 = vld [vmem:[#allocation10 + $0x158] sm:$0xf]
        %v619 = vld [vmem:[#allocation10 + $0x15c] sm:$0xff]
        %v620 = vld [vmem:[#allocation10 + $0x164] sm:$0xf]
        %v621 = vld [vmem:[#allocation10 + $0x168] sm:$0xff]
        %v622 = vld [vmem:[#allocation10 + $0x170] sm:$0xf]
        %v623 = vld [vmem:[#allocation10 + $0x174] sm:$0xff]
        %v624 = vld [vmem:[#allocation10 + $0x17c] sm:$0xf]
        %v625 = vld [vmem:[#allocation10 + $0x180] sm:$0xff]
        %v626 = vld [vmem:[#allocation10 + $0x188] sm:$0xf]
        %v627 = vld [vmem:[#allocation10 + $0x18c] sm:$0xff]
        %v628 = vld [vmem:[#allocation10 + $0x194] sm:$0xf]
        %v629 = vld [vmem:[#allocation10 + $0x198] sm:$0xff]
        %v630 = vld [vmem:[#allocation10 + $0x1a0] sm:$0xf]
        %v631 = vld [vmem:[#allocation10 + $0x1a4] sm:$0xff]
        %v632 = vld [vmem:[#allocation10 + $0x1ac] sm:$0xf]
        %v633 = vld [vmem:[#allocation10 + $0x1b0] sm:$0xff]
        %v634 = vld [vmem:[#allocation10 + $0x1b8] sm:$0xf]
        %v635 = vld [vmem:[#allocation10 + $0x1bc] sm:$0xff]
        %v636 = vld [vmem:[#allocation10 + $0x1c4] sm:$0xf]
        %v637 = vld [vmem:[#allocation10 + $0x1c8] sm:$0xff]
        %v638 = vld [vmem:[#allocation10 + $0x1d0] sm:$0xf]
        %v639 = vld [vmem:[#allocation10 + $0x1d4] sm:$0xff]
        %v640 = vld [vmem:[#allocation10 + $0x1dc] sm:$0xf]
        %v641 = vld [vmem:[#allocation12] sm:$0x7]
        %v643 = vperm.slane %v641, 0
        %v644 = vperm.slane %v641, 1
        %v645 = vperm.slane %v641, 2
        %v729 = vunpack.c.l.b16 %v561
        %v730 = vunpack.c.h.b16 %v561
        %v731 = vunpack.c.l.b16 %v562
        %v732 = vunpack.c.l.b16 %v563
        %v733 = vunpack.c.h.b16 %v563
        %v734 = vunpack.c.l.b16 %v564
        %v735 = vunpack.c.l.b16 %v565
        %v736 = vunpack.c.h.b16 %v565
        %v737 = vunpack.c.l.b16 %v566
        %v738 = vunpack.c.l.b16 %v567
        %v739 = vunpack.c.h.b16 %v567
        %v740 = vunpack.c.l.b16 %v568
        %v741 = vunpack.c.l.b16 %v569
        %v742 = vunpack.c.h.b16 %v569
        %v743 = vunpack.c.l.b16 %v570
        %v744 = vunpack.c.l.b16 %v571
        %v745 = vunpack.c.h.b16 %v571
        %v746 = vunpack.c.l.b16 %v572
        %v747 = vunpack.c.l.b16 %v573
        %v748 = vunpack.c.h.b16 %v573
        %v749 = vunpack.c.l.b16 %v574
        %v750 = vunpack.c.l.b16 %v575
        %v751 = vunpack.c.h.b16 %v575
        %v752 = vunpack.c.l.b16 %v576
        %v753 = vunpack.c.l.b16 %v577
        %v754 = vunpack.c.h.b16 %v577
        %v755 = vunpack.c.l.b16 %v578
        %v756 = vunpack.c.l.b16 %v579
        %v757 = vunpack.c.h.b16 %v579
        %v758 = vunpack.c.l.b16 %v580
        %v759 = vunpack.c.l.b16 %v581
        %v760 = vunpack.c.h.b16 %v581
        %v761 = vunpack.c.l.b16 %v582
        %v762 = vunpack.c.l.b16 %v583
        %v763 = vunpack.c.h.b16 %v583
        %v764 = vunpack.c.l.b16 %v584
        %v765 = vunpack.c.l.b16 %v585
        %v766 = vunpack.c.h.b16 %v585
        %v767 = vunpack.c.l.b16 %v586
        %v768 = vunpack.c.l.b16 %v587
        %v769 = vunpack.c.h.b16 %v587
        %v770 = vunpack.c.l.b16 %v588
        %v771 = vunpack.c.l.b16 %v589
        %v772 = vunpack.c.h.b16 %v589
        %v773 = vunpack.c.l.b16 %v590
        %v774 = vunpack.c.l.b16 %v591
        %v775 = vunpack.c.h.b16 %v591
        %v776 = vunpack.c.l.b16 %v592
        %v777 = vunpack.c.l.b16 %v593
        %v778 = vunpack.c.h.b16 %v593
        %v779 = vunpack.c.l.b16 %v594
        %v780 = vunpack.c.l.b16 %v595
        %v781 = vunpack.c.h.b16 %v595
        %v782 = vunpack.c.l.b16 %v596
        %v783 = vunpack.c.l.b16 %v597
        %v784 = vunpack.c.h.b16 %v597
        %v785 = vunpack.c.l.b16 %v598
        %v786 = vunpack.c.l.b16 %v599
        %v787 = vunpack.c.h.b16 %v599
        %v788 = vunpack.c.l.b16 %v600
        %v789 = vunpack.c.l.b16 %v601
        %v790 = vunpack.c.h.b16 %v601
        %v791 = vunpack.c.l.b16 %v602
        %v792 = vunpack.c.l.b16 %v603
        %v793 = vunpack.c.h.b16 %v603
        %v794 = vunpack.c.l.b16 %v604
        %v795 = vunpack.c.l.b16 %v605
        %v796 = vunpack.c.h.b16 %v605
        %v797 = vunpack.c.l.b16 %v606
        %v798 = vunpack.c.l.b16 %v607
        %v799 = vunpack.c.h.b16 %v607
        %v800 = vunpack.c.l.b16 %v608
        %v801 = vunpack.c.l.b16 %v609
        %v802 = vunpack.c.h.b16 %v609
        %v803 = vunpack.c.l.b16 %v610
        %v804 = vunpack.c.l.b16 %v611
        %v805 = vunpack.c.h.b16 %v611
        %v806 = vunpack.c.l.b16 %v612
        %v807 = vunpack.c.l.b16 %v613
        %v808 = vunpack.c.h.b16 %v613
        %v809 = vunpack.c.l.b16 %v614
        %v810 = vunpack.c.l.b16 %v615
        %v811 = vunpack.c.h.b16 %v615
        %v812 = vunpack.c.l.b16 %v616
        %v813 = vunpack.c.l.b16 %v617
        %v814 = vunpack.c.h.b16 %v617
        %v815 = vunpack.c.l.b16 %v618
        %v816 = vunpack.c.l.b16 %v619
        %v817 = vunpack.c.h.b16 %v619
        %v818 = vunpack.c.l.b16 %v620
        %v819 = vunpack.c.l.b16 %v621
        %v820 = vunpack.c.h.b16 %v621
        %v821 = vunpack.c.l.b16 %v622
        %v822 = vunpack.c.l.b16 %v623
        %v823 = vunpack.c.h.b16 %v623
        %v824 = vunpack.c.l.b16 %v624
        %v825 = vunpack.c.l.b16 %v625
        %v826 = vunpack.c.h.b16 %v625
        %v827 = vunpack.c.l.b16 %v626
        %v828 = vunpack.c.l.b16 %v627
        %v829 = vunpack.c.h.b16 %v627
        %v830 = vunpack.c.l.b16 %v628
        %v831 = vunpack.c.l.b16 %v629
        %v832 = vunpack.c.h.b16 %v629
        %v833 = vunpack.c.l.b16 %v630
        %v834 = vunpack.c.l.b16 %v631
        %v835 = vunpack.c.h.b16 %v631
        %v836 = vunpack.c.l.b16 %v632
        %v837 = vunpack.c.l.b16 %v633
        %v838 = vunpack.c.h.b16 %v633
        %v839 = vunpack.c.l.b16 %v634
        %v840 = vunpack.c.l.b16 %v635
        %v841 = vunpack.c.h.b16 %v635
        %v842 = vunpack.c.l.b16 %v636
        %v843 = vunpack.c.l.b16 %v637
        %v844 = vunpack.c.h.b16 %v637
        %v845 = vunpack.c.l.b16 %v638
        %v846 = vunpack.c.l.b16 %v639
        %v847 = vunpack.c.h.b16 %v639
        %v848 = vunpack.c.l.b16 %v640
        %v849 = vpack.c.b16 %v732, %v729
        %v850 = vpack.c.b16 %v733, %v730
        %v851 = vpack.c.b16 %v734, %v731
        %v852 = vpack.c.b16 %v738, %v735
        %v853 = vpack.c.b16 %v739, %v736
        %v854 = vpack.c.b16 %v740, %v737
        %v855 = vpack.c.b16 %v744, %v741
        %v856 = vpack.c.b16 %v745, %v742
        %v857 = vpack.c.b16 %v746, %v743
        %v858 = vpack.c.b16 %v750, %v747
        %v859 = vpack.c.b16 %v751, %v748
        %v860 = vpack.c.b16 %v752, %v749
        %v861 = vpack.c.b16 %v756, %v753
        %v862 = vpack.c.b16 %v757, %v754
        %v863 = vpack.c.b16 %v758, %v755
        %v864 = vpack.c.b16 %v762, %v759
        %v865 = vpack.c.b16 %v763, %v760
        %v866 = vpack.c.b16 %v764, %v761
        %v867 = vpack.c.b16 %v768, %v765
        %v868 = vpack.c.b16 %v769, %v766
        %v869 = vpack.c.b16 %v770, %v767
        %v870 = vpack.c.b16 %v774, %v771
        %v871 = vpack.c.b16 %v775, %v772
        %v872 = vpack.c.b16 %v776, %v773
        %v873 = vpack.c.b16 %v780, %v777
        %v874 = vpack.c.b16 %v781, %v778
        %v875 = vpack.c.b16 %v782, %v779
        %v876 = vpack.c.b16 %v786, %v783
        %v877 = vpack.c.b16 %v787, %v784
        %v878 = vpack.c.b16 %v788, %v785
        %v879 = vpack.c.b16 %v792, %v789
        %v880 = vpack.c.b16 %v793, %v790
        %v881 = vpack.c.b16 %v794, %v791
        %v882 = vpack.c.b16 %v798, %v795
        %v883 = vpack.c.b16 %v799, %v796
        %v884 = vpack.c.b16 %v800, %v797
        %v885 = vpack.c.b16 %v804, %v801
        %v886 = vpack.c.b16 %v805, %v802
        %v887 = vpack.c.b16 %v806, %v803
        %v888 = vpack.c.b16 %v810, %v807
        %v889 = vpack.c.b16 %v811, %v808
        %v890 = vpack.c.b16 %v812, %v809
        %v891 = vpack.c.b16 %v816, %v813
        %v892 = vpack.c.b16 %v817, %v814
        %v893 = vpack.c.b16 %v818, %v815
        %v894 = vpack.c.b16 %v822, %v819
        %v895 = vpack.c.b16 %v823, %v820
        %v896 = vpack.c.b16 %v824, %v821
        %v897 = vpack.c.b16 %v828, %v825
        %v898 = vpack.c.b16 %v829, %v826
        %v899 = vpack.c.b16 %v830, %v827
        %v900 = vpack.c.b16 %v834, %v831
        %v901 = vpack.c.b16 %v835, %v832
        %v902 = vpack.c.b16 %v836, %v833
        %v903 = vpack.c.b16 %v840, %v837
        %v904 = vpack.c.b16 %v841, %v838
        %v905 = vpack.c.b16 %v842, %v839
        %v906 = vpack.c.b16 %v846, %v843
        %v907 = vpack.c.b16 %v847, %v844
        %v908 = vpack.c.b16 %v848, %v845
        %v970 = vsel %vm525, %v560, 0
        %972 = vmatpush.bf16.msra.mxu0 %v870
        %973 = vmatpush.bf16.msra.mxu0 %v867
        %974 = vmatpush.bf16.msra.mxu0 %v864
        %975 = vmatpush.bf16.msra.mxu0 %v861
        %976 = vmatpush.bf16.msra.mxu0 %v858
        %977 = vmatpush.bf16.msra.mxu0 %v855
        %978 = vmatpush.bf16.msra.mxu0 %v852
        %979 = vmatpush.bf16.msra.mxu0 %v849
        %980 = vmatmul.bf16.gmra.mxu0 %v558
        %v981 = vpop.f32.mrf.mxu0
        %v982 = vadd.f32 %v643, %v981
        %v983 = vpop.f32.mrf.mxu0
        %v984 = vadd.f32 %v643, %v983
        %985 = vdwg.mxu0
        %986 = vmatpush.bf16.msra.mxu0 %v894
        %987 = vmatpush.bf16.msra.mxu0 %v891
        %988 = vmatpush.bf16.msra.mxu0 %v888
        %989 = vmatpush.bf16.msra.mxu0 %v885
        %990 = vmatpush.bf16.msra.mxu0 %v882
        %991 = vmatpush.bf16.msra.mxu0 %v879
        %992 = vmatpush.bf16.msra.mxu0 %v876
        %993 = vmatpush.bf16.msra.mxu0 %v873
        %994 = vmatmul.bf16.gmra.mxu0 %v559
        %v995 = vpop.f32.mrf.mxu0
        %v996 = vadd.f32 %v982, %v995
        %v997 = vpop.f32.mrf.mxu0
        %v998 = vadd.f32 %v984, %v997
        %999 = vdwg.mxu0
        %1000 = vmatpush.bf16.msra.mxu0 0
        %1001 = vmatpush.bf16.msra.mxu0 0
        %1002 = vmatpush.bf16.msra.mxu0 0
        %1003 = vmatpush.bf16.msra.mxu0 0
        %1004 = vmatpush.bf16.msra.mxu0 %v906
        %1005 = vmatpush.bf16.msra.mxu0 %v903
        %1006 = vmatpush.bf16.msra.mxu0 %v900
        %1007 = vmatpush.bf16.msra.mxu0 %v897
        %1008 = vmatmul.bf16.gmra.mxu0 %v970
        %v1009 = vpop.f32.mrf.mxu0
        %v1010 = vadd.f32 %v996, %v1009
        %v1011 = vpop.f32.mrf.mxu0
        %v1012 = vadd.f32 %v998, %v1011
        %1013 = vdwg.mxu0
        %1014 = vmatpush.bf16.msra.mxu0 %v871
        %1015 = vmatpush.bf16.msra.mxu0 %v868
        %1016 = vmatpush.bf16.msra.mxu0 %v865
        %1017 = vmatpush.bf16.msra.mxu0 %v862
        %1018 = vmatpush.bf16.msra.mxu0 %v859
        %1019 = vmatpush.bf16.msra.mxu0 %v856
        %1020 = vmatpush.bf16.msra.mxu0 %v853
        %1021 = vmatpush.bf16.msra.mxu0 %v850
        %1022 = vmatmul.bf16.gmra.mxu0 %v558
        %v1023 = vpop.f32.mrf.mxu0
        %v1024 = vadd.f32 %v644, %v1023
        %v1025 = vpop.f32.mrf.mxu0
        %v1026 = vadd.f32 %v644, %v1025
        %1027 = vdwg.mxu0
        %1028 = vmatpush.bf16.msra.mxu0 %v895
        %1029 = vmatpush.bf16.msra.mxu0 %v892
        %1030 = vmatpush.bf16.msra.mxu0 %v889
        %1031 = vmatpush.bf16.msra.mxu0 %v886
        %1032 = vmatpush.bf16.msra.mxu0 %v883
        %1033 = vmatpush.bf16.msra.mxu0 %v880
        %1034 = vmatpush.bf16.msra.mxu0 %v877
        %1035 = vmatpush.bf16.msra.mxu0 %v874
        %1036 = vmatmul.bf16.gmra.mxu0 %v559
        %v1037 = vpop.f32.mrf.mxu0
        %v1038 = vadd.f32 %v1024, %v1037
        %v1039 = vpop.f32.mrf.mxu0
        %v1040 = vadd.f32 %v1026, %v1039
        %1041 = vdwg.mxu0
        %1042 = vmatpush.bf16.msra.mxu0 0
        %1043 = vmatpush.bf16.msra.mxu0 0
        %1044 = vmatpush.bf16.msra.mxu0 0
        %1045 = vmatpush.bf16.msra.mxu0 0
        %1046 = vmatpush.bf16.msra.mxu0 %v907
        %1047 = vmatpush.bf16.msra.mxu0 %v904
        %1048 = vmatpush.bf16.msra.mxu0 %v901
        %1049 = vmatpush.bf16.msra.mxu0 %v898
        %1050 = vmatmul.bf16.gmra.mxu0 %v970
        %v1051 = vpop.f32.mrf.mxu0
        %v1052 = vadd.f32 %v1038, %v1051
        %v1053 = vpop.f32.mrf.mxu0
        %v1054 = vadd.f32 %v1040, %v1053
        %1055 = vdwg.mxu0
        %1056 = vmatpush.bf16.msra.mxu0 %v872
        %1057 = vmatpush.bf16.msra.mxu0 %v869
        %1058 = vmatpush.bf16.msra.mxu0 %v866
        %1059 = vmatpush.bf16.msra.mxu0 %v863
        %1060 = vmatpush.bf16.msra.mxu0 %v860
        %1061 = vmatpush.bf16.msra.mxu0 %v857
        %1062 = vmatpush.bf16.msra.mxu0 %v854
        %1063 = vmatpush.bf16.msra.mxu0 %v851
        %1064 = vmatmul.bf16.gmra.mxu0 %v558
        %v1065 = vpop.f32.mrf.mxu0
        %v1066 = vadd.f32 %v645, %v1065
        %v1067 = vpop.f32.mrf.mxu0
        %v1068 = vadd.f32 %v645, %v1067
        %1069 = vdwg.mxu0
        %1070 = vmatpush.bf16.msra.mxu0 %v896
        %1071 = vmatpush.bf16.msra.mxu0 %v893
        %1072 = vmatpush.bf16.msra.mxu0 %v890
        %1073 = vmatpush.bf16.msra.mxu0 %v887
        %1074 = vmatpush.bf16.msra.mxu0 %v884
        %1075 = vmatpush.bf16.msra.mxu0 %v881
        %1076 = vmatpush.bf16.msra.mxu0 %v878
        %1077 = vmatpush.bf16.msra.mxu0 %v875
        %1078 = vmatmul.bf16.gmra.mxu0 %v559
        %v1079 = vpop.f32.mrf.mxu0
        %v1080 = vadd.f32 %v1066, %v1079
        %v1081 = vpop.f32.mrf.mxu0
        %v1082 = vadd.f32 %v1068, %v1081
        %1083 = vdwg.mxu0
        %1084 = vmatpush.bf16.msra.mxu0 0
        %1085 = vmatpush.bf16.msra.mxu0 0
        %1086 = vmatpush.bf16.msra.mxu0 0
        %1087 = vmatpush.bf16.msra.mxu0 0
        %1088 = vmatpush.bf16.msra.mxu0 %v908
        %1089 = vmatpush.bf16.msra.mxu0 %v905
        %1090 = vmatpush.bf16.msra.mxu0 %v902
        %1091 = vmatpush.bf16.msra.mxu0 %v899
        %1092 = vmatmul.bf16.gmra.mxu0 %v970
        %v1093 = vpop.f32.mrf.mxu0
        %v1094 = vadd.f32 %v1080, %v1093
        %v1095 = vpop.f32.mrf.mxu0
        %v1096 = vadd.f32 %v1082, %v1095
        %1097 = vdwg.mxu0
        %v1098 = vmax.f32 %v1010, 0.0
        %v1099 = vmax.f32 %v1052, 0.0
        %v1100 = vmax.f32 %v1094, 0.0
        %v1101 = vmax.f32 %v1012, 0.0
        %v1102 = vmax.f32 %v1054, 0.0
        %v1103 = vmax.f32 %v1096, 0.0
        %1104 = vst [vmem:[#allocation3 + $0x2] sm:$0xff] %v1098
        %1105 = vst [vmem:[#allocation3 + $0xa] sm:$0xff] %v1101
        %v1106 = vld [vmem:[#allocation3] sm:$0xff]
        %v1107 = vld [vmem:[#allocation3 + $0x8] sm:$0xff]
        %v1108 = vld [vmem:[#allocation3 + $0x2] sm:$0xff]
        %v1109 = vld [vmem:[#allocation3 + $0xa] sm:$0xff]
        %v1110 = vld [vmem:[#allocation3 + $0x4] sm:$0xff]
        %v1111 = vld [vmem:[#allocation3 + $0xc] sm:$0xff]
        %v1112 = vpack.c.bf16 %v1107, %v1106
        %v1113 = vpack.c.bf16 %v1109, %v1108
        %v1114 = vpack.c.bf16 %v1111, %v1110
        %v1115 = vld [vmem:[#allocation13] sm:$0xf]
        %v1116 = vld [vmem:[#allocation13 + $0x4] sm:$0xf]
        %v1117 = vld [vmem:[#allocation13 + $0x8] sm:$0xf]
        %v1118 = vld [vmem:[#allocation13 + $0xc] sm:$0xf]
        %v1119 = vld [vmem:[#allocation13 + $0x10] sm:$0xf]
        %v1120 = vld [vmem:[#allocation13 + $0x14] sm:$0xf]
        %v1121 = vld [vmem:[#allocation13 + $0x18] sm:$0xf]
        %v1122 = vld [vmem:[#allocation13 + $0x1c] sm:$0xf]
        %v1123 = vld [vmem:[#allocation13 + $0x20] sm:$0xf]
        %v1124 = vld [vmem:[#allocation13 + $0x24] sm:$0xf]
        %v1125 = vld [vmem:[#allocation13 + $0x28] sm:$0xf]
        %v1126 = vld [vmem:[#allocation13 + $0x2c] sm:$0xf]
        %v1127 = vld [vmem:[#allocation13 + $0x30] sm:$0xf]
        %v1128 = vld [vmem:[#allocation13 + $0x34] sm:$0xf]
        %v1129 = vld [vmem:[#allocation13 + $0x38] sm:$0xf]
        %v1130 = vld [vmem:[#allocation13 + $0x3c] sm:$0xf]
        %v1131 = vld [vmem:[#allocation13 + $0x40] sm:$0xf]
        %v1132 = vld [vmem:[#allocation13 + $0x44] sm:$0xf]
        %v1133 = vld [vmem:[#allocation13 + $0x48] sm:$0xf]
        %v1134 = vld [vmem:[#allocation13 + $0x4c] sm:$0xf]
        %v1135 = vld [vmem:[#allocation13 + $0x50] sm:$0xf]
        %v1136 = vld [vmem:[#allocation13 + $0x54] sm:$0xf]
        %v1137 = vld [vmem:[#allocation13 + $0x58] sm:$0xf]
        %v1138 = vld [vmem:[#allocation13 + $0x5c] sm:$0xf]
        %v1139 = vld [vmem:[#allocation13 + $0x60] sm:$0xf]
        %v1140 = vld [vmem:[#allocation13 + $0x64] sm:$0xf]
        %v1141 = vld [vmem:[#allocation13 + $0x68] sm:$0xf]
        %v1142 = vld [vmem:[#allocation13 + $0x6c] sm:$0xf]
        %v1143 = vld [vmem:[#allocation13 + $0x70] sm:$0xf]
        %v1144 = vld [vmem:[#allocation13 + $0x74] sm:$0xf]
        %v1145 = vld [vmem:[#allocation13 + $0x78] sm:$0xf]
        %v1146 = vld [vmem:[#allocation13 + $0x7c] sm:$0xf]
        %v1147 = vld [vmem:[#allocation13 + $0x80] sm:$0xf]
        %v1148 = vld [vmem:[#allocation13 + $0x84] sm:$0xf]
        %v1149 = vld [vmem:[#allocation13 + $0x88] sm:$0xf]
        %v1150 = vld [vmem:[#allocation13 + $0x8c] sm:$0xf]
        %v1151 = vld [vmem:[#allocation13 + $0x90] sm:$0xf]
        %v1152 = vld [vmem:[#allocation13 + $0x94] sm:$0xf]
        %v1153 = vld [vmem:[#allocation13 + $0x98] sm:$0xf]
        %v1154 = vld [vmem:[#allocation13 + $0x9c] sm:$0xf]
        %v1155 = vld [vmem:[#allocation13 + $0xa0] sm:$0xf]
        %v1156 = vld [vmem:[#allocation13 + $0xa4] sm:$0xf]
        %v1157 = vld [vmem:[#allocation13 + $0xa8] sm:$0xf]
        %v1158 = vld [vmem:[#allocation13 + $0xac] sm:$0xf]
        %v1159 = vld [vmem:[#allocation13 + $0xb0] sm:$0xf]
        %v1160 = vld [vmem:[#allocation13 + $0xb4] sm:$0xf]
        %v1161 = vld [vmem:[#allocation13 + $0xb8] sm:$0xf]
        %v1162 = vld [vmem:[#allocation13 + $0xbc] sm:$0xf]
        %v1163 = vld [vmem:[%s4] sm:$0x1]
        %v1165 = vperm.slane %v1163, 0
        %v1215 = vunpack.c.l.b16 %v1115
        %v1216 = vunpack.c.l.b16 %v1116
        %v1217 = vunpack.c.l.b16 %v1117
        %v1218 = vunpack.c.l.b16 %v1118
        %v1219 = vunpack.c.l.b16 %v1119
        %v1220 = vunpack.c.l.b16 %v1120
        %v1221 = vunpack.c.l.b16 %v1121
        %v1222 = vunpack.c.l.b16 %v1122
        %v1223 = vunpack.c.l.b16 %v1123
        %v1224 = vunpack.c.l.b16 %v1124
        %v1225 = vunpack.c.l.b16 %v1125
        %v1226 = vunpack.c.l.b16 %v1126
        %v1227 = vunpack.c.l.b16 %v1127
        %v1228 = vunpack.c.l.b16 %v1128
        %v1229 = vunpack.c.l.b16 %v1129
        %v1230 = vunpack.c.l.b16 %v1130
        %v1231 = vunpack.c.l.b16 %v1131
        %v1232 = vunpack.c.l.b16 %v1132
        %v1233 = vunpack.c.l.b16 %v1133
        %v1234 = vunpack.c.l.b16 %v1134
        %v1235 = vunpack.c.l.b16 %v1135
        %v1236 = vunpack.c.l.b16 %v1136
        %v1237 = vunpack.c.l.b16 %v1137
        %v1238 = vunpack.c.l.b16 %v1138
        %v1239 = vunpack.c.l.b16 %v1139
        %v1240 = vunpack.c.l.b16 %v1140
        %v1241 = vunpack.c.l.b16 %v1141
        %v1242 = vunpack.c.l.b16 %v1142
        %v1243 = vunpack.c.l.b16 %v1143
        %v1244 = vunpack.c.l.b16 %v1144
        %v1245 = vunpack.c.l.b16 %v1145
        %v1246 = vunpack.c.l.b16 %v1146
        %v1247 = vunpack.c.l.b16 %v1147
        %v1248 = vunpack.c.l.b16 %v1148
        %v1249 = vunpack.c.l.b16 %v1149
        %v1250 = vunpack.c.l.b16 %v1150
        %v1251 = vunpack.c.l.b16 %v1151
        %v1252 = vunpack.c.l.b16 %v1152
        %v1253 = vunpack.c.l.b16 %v1153
        %v1254 = vunpack.c.l.b16 %v1154
        %v1255 = vunpack.c.l.b16 %v1155
        %v1256 = vunpack.c.l.b16 %v1156
        %v1257 = vunpack.c.l.b16 %v1157
        %v1258 = vunpack.c.l.b16 %v1158
        %v1259 = vunpack.c.l.b16 %v1159
        %v1260 = vunpack.c.l.b16 %v1160
        %v1261 = vunpack.c.l.b16 %v1161
        %v1262 = vunpack.c.l.b16 %v1162
        %v1263 = vpack.c.b16 %v1216, %v1215
        %v1264 = vpack.c.b16 %v1218, %v1217
        %v1265 = vpack.c.b16 %v1220, %v1219
        %v1266 = vpack.c.b16 %v1222, %v1221
        %v1267 = vpack.c.b16 %v1224, %v1223
        %v1268 = vpack.c.b16 %v1226, %v1225
        %v1269 = vpack.c.b16 %v1228, %v1227
        %v1270 = vpack.c.b16 %v1230, %v1229
        %v1271 = vpack.c.b16 %v1232, %v1231
        %v1272 = vpack.c.b16 %v1234, %v1233
        %v1273 = vpack.c.b16 %v1236, %v1235
        %v1274 = vpack.c.b16 %v1238, %v1237
        %v1275 = vpack.c.b16 %v1240, %v1239
        %v1276 = vpack.c.b16 %v1242, %v1241
        %v1277 = vpack.c.b16 %v1244, %v1243
        %v1278 = vpack.c.b16 %v1246, %v1245
        %v1279 = vpack.c.b16 %v1248, %v1247
        %v1280 = vpack.c.b16 %v1250, %v1249
        %v1281 = vpack.c.b16 %v1252, %v1251
        %v1282 = vpack.c.b16 %v1254, %v1253
        %v1283 = vpack.c.b16 %v1256, %v1255
        %v1284 = vpack.c.b16 %v1258, %v1257
        %v1285 = vpack.c.b16 %v1260, %v1259
        %v1286 = vpack.c.b16 %v1262, %v1261
        %1311 = vmatpush.bf16.msra.mxu0 %v1270
        %1312 = vmatpush.bf16.msra.mxu0 %v1269
        %1313 = vmatpush.bf16.msra.mxu0 %v1268
        %1314 = vmatpush.bf16.msra.mxu0 %v1267
        %1315 = vmatpush.bf16.msra.mxu0 %v1266
        %1316 = vmatpush.bf16.msra.mxu0 %v1265
        %1317 = vmatpush.bf16.msra.mxu0 %v1264
        %1318 = vmatpush.bf16.msra.mxu0 %v1263
        %1319 = vmatmul.bf16.gmra.mxu0 %v1112
        %v1320 = vpop.f32.mrf.mxu0
        %v1321 = vadd.f32 %v1165, %v1320
        %v1322 = vpop.f32.mrf.mxu0
        %v1323 = vadd.f32 %v1165, %v1322
        %1324 = vdwg.mxu0
        %1325 = vmatpush.bf16.msra.mxu0 %v1278
        %1326 = vmatpush.bf16.msra.mxu0 %v1277
        %1327 = vmatpush.bf16.msra.mxu0 %v1276
        %1328 = vmatpush.bf16.msra.mxu0 %v1275
        %1329 = vmatpush.bf16.msra.mxu0 %v1274
        %1330 = vmatpush.bf16.msra.mxu0 %v1273
        %1331 = vmatpush.bf16.msra.mxu0 %v1272
        %1332 = vmatpush.bf16.msra.mxu0 %v1271
        %1333 = vmatmul.bf16.gmra.mxu0 %v1113
        %v1334 = vpop.f32.mrf.mxu0
        %v1335 = vadd.f32 %v1321, %v1334
        %v1336 = vpop.f32.mrf.mxu0
        %v1337 = vadd.f32 %v1323, %v1336
        %1338 = vdwg.mxu0
        %1339 = vmatpush.bf16.msra.mxu0 %v1286
        %1340 = vmatpush.bf16.msra.mxu0 %v1285
        %1341 = vmatpush.bf16.msra.mxu0 %v1284
        %1342 = vmatpush.bf16.msra.mxu0 %v1283
        %1343 = vmatpush.bf16.msra.mxu0 %v1282
        %1344 = vmatpush.bf16.msra.mxu0 %v1281
        %1345 = vmatpush.bf16.msra.mxu0 %v1280
        %1346 = vmatpush.bf16.msra.mxu0 %v1279
        %1347 = vmatmul.bf16.gmra.mxu0 %v1114
        %v1348 = vpop.f32.mrf.mxu0
        %v1349 = vadd.f32 %v1335, %v1348
        %v1350 = vpop.f32.mrf.mxu0
        %v1351 = vadd.f32 %v1337, %v1350
        %1352 = vdwg.mxu0
        %v1353 = vmax.f32 %v1349, 0.0
        %v1354 = vmax.f32 %v1351, 0.0
        %vm1357 = vcmask 1040384
        %v1358 = vrot.slane %v1353, 7
        %v1359 = vrot.slane %v1354, 7
        %v1360 = vsel %vm1357, %v1358, %v1359
        %1364 = vst [vmem:[#allocation6] sm:$0xfe] %v1358
        %1365 = vst [vmem:[#allocation6 + $0x18] sm:$0xff] %v1360
        %1366 = vst [vmem:[#allocation6 + $0x30] sm:$0x1] %v1359
        %1367 = vst [vmem:[#allocation4 + $0x4] sm:$0xff] %v1099
        %1368 = vst [vmem:[#allocation4 + $0xc] sm:$0xff] %v1102
        %v1369 = vld [vmem:[#allocation4] sm:$0xff]
        %v1370 = vld [vmem:[#allocation4 + $0x8] sm:$0xff]
        %v1371 = vld [vmem:[#allocation4 + $0x4] sm:$0xff]
        %v1372 = vld [vmem:[#allocation4 + $0xc] sm:$0xff]
        %v1373 = vld [vmem:[#allocation4 + $0x8] sm:$0xff]
        %v1374 = vld [vmem:[#allocation4 + $0x10] sm:$0xff]
        %v1375 = vpack.c.bf16 %v1370, %v1369
        %v1376 = vpack.c.bf16 %v1372, %v1371
        %v1377 = vpack.c.bf16 %v1374, %v1373
        %v1378 = vld [vmem:[#allocation15] sm:$0xf]
        %v1379 = vld [vmem:[#allocation15 + $0x4] sm:$0xf]
        %v1380 = vld [vmem:[#allocation15 + $0x8] sm:$0xf]
        %v1381 = vld [vmem:[#allocation15 + $0xc] sm:$0xf]
        %v1382 = vld [vmem:[#allocation15 + $0x10] sm:$0xf]
        %v1383 = vld [vmem:[#allocation15 + $0x14] sm:$0xf]
        %v1384 = vld [vmem:[#allocation15 + $0x18] sm:$0xf]
        %v1385 = vld [vmem:[#allocation15 + $0x1c] sm:$0xf]
        %v1386 = vld [vmem:[#allocation15 + $0x20] sm:$0xf]
        %v1387 = vld [vmem:[#allocation15 + $0x24] sm:$0xf]
        %v1388 = vld [vmem:[#allocation15 + $0x28] sm:$0xf]
        %v1389 = vld [vmem:[#allocation15 + $0x2c] sm:$0xf]
        %v1390 = vld [vmem:[#allocation15 + $0x30] sm:$0xf]
        %v1391 = vld [vmem:[#allocation15 + $0x34] sm:$0xf]
        %v1392 = vld [vmem:[#allocation15 + $0x38] sm:$0xf]
        %v1393 = vld [vmem:[#allocation15 + $0x3c] sm:$0xf]
        %v1394 = vld [vmem:[#allocation15 + $0x40] sm:$0xf]
        %v1395 = vld [vmem:[#allocation15 + $0x44] sm:$0xf]
        %v1396 = vld [vmem:[#allocation15 + $0x48] sm:$0xf]
        %v1397 = vld [vmem:[#allocation15 + $0x4c] sm:$0xf]
        %v1398 = vld [vmem:[#allocation15 + $0x50] sm:$0xf]
        %v1399 = vld [vmem:[#allocation15 + $0x54] sm:$0xf]
        %v1400 = vld [vmem:[#allocation15 + $0x58] sm:$0xf]
        %v1401 = vld [vmem:[#allocation15 + $0x5c] sm:$0xf]
        %v1402 = vld [vmem:[#allocation15 + $0x60] sm:$0xf]
        %v1403 = vld [vmem:[#allocation15 + $0x64] sm:$0xf]
        %v1404 = vld [vmem:[#allocation15 + $0x68] sm:$0xf]
        %v1405 = vld [vmem:[#allocation15 + $0x6c] sm:$0xf]
        %v1406 = vld [vmem:[#allocation15 + $0x70] sm:$0xf]
        %v1407 = vld [vmem:[#allocation15 + $0x74] sm:$0xf]
        %v1408 = vld [vmem:[#allocation15 + $0x78] sm:$0xf]
        %v1409 = vld [vmem:[#allocation15 + $0x7c] sm:$0xf]
        %v1410 = vld [vmem:[#allocation15 + $0x80] sm:$0xf]
        %v1411 = vld [vmem:[#allocation15 + $0x84] sm:$0xf]
        %v1412 = vld [vmem:[#allocation15 + $0x88] sm:$0xf]
        %v1413 = vld [vmem:[#allocation15 + $0x8c] sm:$0xf]
        %v1414 = vld [vmem:[#allocation15 + $0x90] sm:$0xf]
        %v1415 = vld [vmem:[#allocation15 + $0x94] sm:$0xf]
        %v1416 = vld [vmem:[#allocation15 + $0x98] sm:$0xf]
        %v1417 = vld [vmem:[#allocation15 + $0x9c] sm:$0xf]
        %v1418 = vld [vmem:[#allocation15 + $0xa0] sm:$0xf]
        %v1419 = vld [vmem:[#allocation15 + $0xa4] sm:$0xf]
        %v1420 = vld [vmem:[#allocation15 + $0xa8] sm:$0xf]
        %v1421 = vld [vmem:[#allocation15 + $0xac] sm:$0xf]
        %v1422 = vld [vmem:[#allocation15 + $0xb0] sm:$0xf]
        %v1423 = vld [vmem:[#allocation15 + $0xb4] sm:$0xf]
        %v1424 = vld [vmem:[#allocation15 + $0xb8] sm:$0xf]
        %v1425 = vld [vmem:[#allocation15 + $0xbc] sm:$0xf]
        %v1426 = vld [vmem:[%s6] sm:$0x1]
        %v1428 = vperm.slane %v1426, 0
        %v1478 = vunpack.c.l.b16 %v1378
        %v1479 = vunpack.c.l.b16 %v1379
        %v1480 = vunpack.c.l.b16 %v1380
        %v1481 = vunpack.c.l.b16 %v1381
        %v1482 = vunpack.c.l.b16 %v1382
        %v1483 = vunpack.c.l.b16 %v1383
        %v1484 = vunpack.c.l.b16 %v1384
        %v1485 = vunpack.c.l.b16 %v1385
        %v1486 = vunpack.c.l.b16 %v1386
        %v1487 = vunpack.c.l.b16 %v1387
        %v1488 = vunpack.c.l.b16 %v1388
        %v1489 = vunpack.c.l.b16 %v1389
        %v1490 = vunpack.c.l.b16 %v1390
        %v1491 = vunpack.c.l.b16 %v1391
        %v1492 = vunpack.c.l.b16 %v1392
        %v1493 = vunpack.c.l.b16 %v1393
        %v1494 = vunpack.c.l.b16 %v1394
        %v1495 = vunpack.c.l.b16 %v1395
        %v1496 = vunpack.c.l.b16 %v1396
        %v1497 = vunpack.c.l.b16 %v1397
        %v1498 = vunpack.c.l.b16 %v1398
        %v1499 = vunpack.c.l.b16 %v1399
        %v1500 = vunpack.c.l.b16 %v1400
        %v1501 = vunpack.c.l.b16 %v1401
        %v1502 = vunpack.c.l.b16 %v1402
        %v1503 = vunpack.c.l.b16 %v1403
        %v1504 = vunpack.c.l.b16 %v1404
        %v1505 = vunpack.c.l.b16 %v1405
        %v1506 = vunpack.c.l.b16 %v1406
        %v1507 = vunpack.c.l.b16 %v1407
        %v1508 = vunpack.c.l.b16 %v1408
        %v1509 = vunpack.c.l.b16 %v1409
        %v1510 = vunpack.c.l.b16 %v1410
        %v1511 = vunpack.c.l.b16 %v1411
        %v1512 = vunpack.c.l.b16 %v1412
        %v1513 = vunpack.c.l.b16 %v1413
        %v1514 = vunpack.c.l.b16 %v1414
        %v1515 = vunpack.c.l.b16 %v1415
        %v1516 = vunpack.c.l.b16 %v1416
        %v1517 = vunpack.c.l.b16 %v1417
        %v1518 = vunpack.c.l.b16 %v1418
        %v1519 = vunpack.c.l.b16 %v1419
        %v1520 = vunpack.c.l.b16 %v1420
        %v1521 = vunpack.c.l.b16 %v1421
        %v1522 = vunpack.c.l.b16 %v1422
        %v1523 = vunpack.c.l.b16 %v1423
        %v1524 = vunpack.c.l.b16 %v1424
        %v1525 = vunpack.c.l.b16 %v1425
        %v1526 = vpack.c.b16 %v1479, %v1478
        %v1527 = vpack.c.b16 %v1481, %v1480
        %v1528 = vpack.c.b16 %v1483, %v1482
        %v1529 = vpack.c.b16 %v1485, %v1484
        %v1530 = vpack.c.b16 %v1487, %v1486
        %v1531 = vpack.c.b16 %v1489, %v1488
        %v1532 = vpack.c.b16 %v1491, %v1490
        %v1533 = vpack.c.b16 %v1493, %v1492
        %v1534 = vpack.c.b16 %v1495, %v1494
        %v1535 = vpack.c.b16 %v1497, %v1496
        %v1536 = vpack.c.b16 %v1499, %v1498
        %v1537 = vpack.c.b16 %v1501, %v1500
        %v1538 = vpack.c.b16 %v1503, %v1502
        %v1539 = vpack.c.b16 %v1505, %v1504
        %v1540 = vpack.c.b16 %v1507, %v1506
        %v1541 = vpack.c.b16 %v1509, %v1508
        %v1542 = vpack.c.b16 %v1511, %v1510
        %v1543 = vpack.c.b16 %v1513, %v1512
        %v1544 = vpack.c.b16 %v1515, %v1514
        %v1545 = vpack.c.b16 %v1517, %v1516
        %v1546 = vpack.c.b16 %v1519, %v1518
        %v1547 = vpack.c.b16 %v1521, %v1520
        %v1548 = vpack.c.b16 %v1523, %v1522
        %v1549 = vpack.c.b16 %v1525, %v1524
        %1574 = vmatpush.bf16.msra.mxu0 %v1533
        %1575 = vmatpush.bf16.msra.mxu0 %v1532
        %1576 = vmatpush.bf16.msra.mxu0 %v1531
        %1577 = vmatpush.bf16.msra.mxu0 %v1530
        %1578 = vmatpush.bf16.msra.mxu0 %v1529
        %1579 = vmatpush.bf16.msra.mxu0 %v1528
        %1580 = vmatpush.bf16.msra.mxu0 %v1527
        %1581 = vmatpush.bf16.msra.mxu0 %v1526
        %1582 = vmatmul.bf16.gmra.mxu0 %v1375
        %v1583 = vpop.f32.mrf.mxu0
        %v1584 = vadd.f32 %v1428, %v1583
        %v1585 = vpop.f32.mrf.mxu0
        %v1586 = vadd.f32 %v1428, %v1585
        %1587 = vdwg.mxu0
        %1588 = vmatpush.bf16.msra.mxu0 %v1541
        %1589 = vmatpush.bf16.msra.mxu0 %v1540
        %1590 = vmatpush.bf16.msra.mxu0 %v1539
        %1591 = vmatpush.bf16.msra.mxu0 %v1538
        %1592 = vmatpush.bf16.msra.mxu0 %v1537
        %1593 = vmatpush.bf16.msra.mxu0 %v1536
        %1594 = vmatpush.bf16.msra.mxu0 %v1535
        %1595 = vmatpush.bf16.msra.mxu0 %v1534
        %1596 = vmatmul.bf16.gmra.mxu0 %v1376
        %v1597 = vpop.f32.mrf.mxu0
        %v1598 = vadd.f32 %v1584, %v1597
        %v1599 = vpop.f32.mrf.mxu0
        %v1600 = vadd.f32 %v1586, %v1599
        %1601 = vdwg.mxu0
        %1602 = vmatpush.bf16.msra.mxu0 %v1549
        %1603 = vmatpush.bf16.msra.mxu0 %v1548
        %1604 = vmatpush.bf16.msra.mxu0 %v1547
        %1605 = vmatpush.bf16.msra.mxu0 %v1546
        %1606 = vmatpush.bf16.msra.mxu0 %v1545
        %1607 = vmatpush.bf16.msra.mxu0 %v1544
        %1608 = vmatpush.bf16.msra.mxu0 %v1543
        %1609 = vmatpush.bf16.msra.mxu0 %v1542
        %1610 = vmatmul.bf16.gmra.mxu0 %v1377
        %v1611 = vpop.f32.mrf.mxu0
        %v1612 = vadd.f32 %v1598, %v1611
        %v1613 = vpop.f32.mrf.mxu0
        %v1614 = vadd.f32 %v1600, %v1613
        %1615 = vdwg.mxu0
        %v1616 = vmax.f32 %v1612, 0.0
        %v1617 = vmax.f32 %v1614, 0.0
        %v1620 = vrot.slane %v1616, 7
        %v1621 = vrot.slane %v1617, 7
        %v1622 = vsel %vm1357, %v1620, %v1621
        %1626 = vst [vmem:[#allocation6 + $0x8] sm:$0xfe] %v1620
        %1627 = vst [vmem:[#allocation6 + $0x20] sm:$0xff] %v1622
        %1628 = vst [vmem:[#allocation6 + $0x38] sm:$0x1] %v1621
        %1629 = vst [vmem:[#allocation5 + $0x8] sm:$0xff] %v1100
        %1630 = vst [vmem:[#allocation5 + $0x10] sm:$0xff] %v1103
        %v1631 = vld [vmem:[#allocation5] sm:$0xff]
        %v1632 = vld [vmem:[#allocation5 + $0x8] sm:$0xff]
        %v1633 = vld [vmem:[#allocation5 + $0x10] sm:$0xff]
        %v1634 = vld [vmem:[#allocation5 + $0x10] sm:$0xff]
        %v1635 = vld [vmem:[#allocation5 + $0x18] sm:$0xff]
        %v1636 = vpack.c.bf16 %v1632, %v1631
        %v1637 = vpack.c.bf16 %v1633, %v1632
        %v1638 = vpack.c.bf16 %v1635, %v1634
        %v1639 = vld [vmem:[#allocation16] sm:$0xf]
        %v1640 = vld [vmem:[#allocation16 + $0x4] sm:$0xf]
        %v1641 = vld [vmem:[#allocation16 + $0x8] sm:$0xf]
        %v1642 = vld [vmem:[#allocation16 + $0xc] sm:$0xf]
        %v1643 = vld [vmem:[#allocation16 + $0x10] sm:$0xf]
        %v1644 = vld [vmem:[#allocation16 + $0x14] sm:$0xf]
        %v1645 = vld [vmem:[#allocation16 + $0x18] sm:$0xf]
        %v1646 = vld [vmem:[#allocation16 + $0x1c] sm:$0xf]
        %v1647 = vld [vmem:[#allocation16 + $0x20] sm:$0xf]
        %v1648 = vld [vmem:[#allocation16 + $0x24] sm:$0xf]
        %v1649 = vld [vmem:[#allocation16 + $0x28] sm:$0xf]
        %v1650 = vld [vmem:[#allocation16 + $0x2c] sm:$0xf]
        %v1651 = vld [vmem:[#allocation16 + $0x30] sm:$0xf]
        %v1652 = vld [vmem:[#allocation16 + $0x34] sm:$0xf]
        %v1653 = vld [vmem:[#allocation16 + $0x38] sm:$0xf]
        %v1654 = vld [vmem:[#allocation16 + $0x3c] sm:$0xf]
        %v1655 = vld [vmem:[#allocation16 + $0x40] sm:$0xf]
        %v1656 = vld [vmem:[#allocation16 + $0x44] sm:$0xf]
        %v1657 = vld [vmem:[#allocation16 + $0x48] sm:$0xf]
        %v1658 = vld [vmem:[#allocation16 + $0x4c] sm:$0xf]
        %v1659 = vld [vmem:[#allocation16 + $0x50] sm:$0xf]
        %v1660 = vld [vmem:[#allocation16 + $0x54] sm:$0xf]
        %v1661 = vld [vmem:[#allocation16 + $0x58] sm:$0xf]
        %v1662 = vld [vmem:[#allocation16 + $0x5c] sm:$0xf]
        %v1663 = vld [vmem:[#allocation16 + $0x60] sm:$0xf]
        %v1664 = vld [vmem:[#allocation16 + $0x64] sm:$0xf]
        %v1665 = vld [vmem:[#allocation16 + $0x68] sm:$0xf]
        %v1666 = vld [vmem:[#allocation16 + $0x6c] sm:$0xf]
        %v1667 = vld [vmem:[#allocation16 + $0x70] sm:$0xf]
        %v1668 = vld [vmem:[#allocation16 + $0x74] sm:$0xf]
        %v1669 = vld [vmem:[#allocation16 + $0x78] sm:$0xf]
        %v1670 = vld [vmem:[#allocation16 + $0x7c] sm:$0xf]
        %v1671 = vld [vmem:[#allocation16 + $0x80] sm:$0xf]
        %v1672 = vld [vmem:[#allocation16 + $0x84] sm:$0xf]
        %v1673 = vld [vmem:[#allocation16 + $0x88] sm:$0xf]
        %v1674 = vld [vmem:[#allocation16 + $0x8c] sm:$0xf]
        %v1675 = vld [vmem:[#allocation16 + $0x90] sm:$0xf]
        %v1676 = vld [vmem:[#allocation16 + $0x94] sm:$0xf]
        %v1677 = vld [vmem:[#allocation16 + $0x98] sm:$0xf]
        %v1678 = vld [vmem:[#allocation16 + $0x9c] sm:$0xf]
        %v1679 = vld [vmem:[#allocation16 + $0xa0] sm:$0xf]
        %v1680 = vld [vmem:[#allocation16 + $0xa4] sm:$0xf]
        %v1681 = vld [vmem:[#allocation16 + $0xa8] sm:$0xf]
        %v1682 = vld [vmem:[#allocation16 + $0xac] sm:$0xf]
        %v1683 = vld [vmem:[#allocation16 + $0xb0] sm:$0xf]
        %v1684 = vld [vmem:[#allocation16 + $0xb4] sm:$0xf]
        %v1685 = vld [vmem:[#allocation16 + $0xb8] sm:$0xf]
        %v1686 = vld [vmem:[#allocation16 + $0xbc] sm:$0xf]
        %v1687 = vld [vmem:[%s8] sm:$0x1]
        %v1689 = vperm.slane %v1687, 0
        %v1739 = vunpack.c.l.b16 %v1639
        %v1740 = vunpack.c.l.b16 %v1640
        %v1741 = vunpack.c.l.b16 %v1641
        %v1742 = vunpack.c.l.b16 %v1642
        %v1743 = vunpack.c.l.b16 %v1643
        %v1744 = vunpack.c.l.b16 %v1644
        %v1745 = vunpack.c.l.b16 %v1645
        %v1746 = vunpack.c.l.b16 %v1646
        %v1747 = vunpack.c.l.b16 %v1647
        %v1748 = vunpack.c.l.b16 %v1648
        %v1749 = vunpack.c.l.b16 %v1649
        %v1750 = vunpack.c.l.b16 %v1650
        %v1751 = vunpack.c.l.b16 %v1651
        %v1752 = vunpack.c.l.b16 %v1652
        %v1753 = vunpack.c.l.b16 %v1653
        %v1754 = vunpack.c.l.b16 %v1654
        %v1755 = vunpack.c.l.b16 %v1655
        %v1756 = vunpack.c.l.b16 %v1656
        %v1757 = vunpack.c.l.b16 %v1657
        %v1758 = vunpack.c.l.b16 %v1658
        %v1759 = vunpack.c.l.b16 %v1659
        %v1760 = vunpack.c.l.b16 %v1660
        %v1761 = vunpack.c.l.b16 %v1661
        %v1762 = vunpack.c.l.b16 %v1662
        %v1763 = vunpack.c.l.b16 %v1663
        %v1764 = vunpack.c.l.b16 %v1664
        %v1765 = vunpack.c.l.b16 %v1665
        %v1766 = vunpack.c.l.b16 %v1666
        %v1767 = vunpack.c.l.b16 %v1667
        %v1768 = vunpack.c.l.b16 %v1668
        %v1769 = vunpack.c.l.b16 %v1669
        %v1770 = vunpack.c.l.b16 %v1670
        %v1771 = vunpack.c.l.b16 %v1671
        %v1772 = vunpack.c.l.b16 %v1672
        %v1773 = vunpack.c.l.b16 %v1673
        %v1774 = vunpack.c.l.b16 %v1674
        %v1775 = vunpack.c.l.b16 %v1675
        %v1776 = vunpack.c.l.b16 %v1676
        %v1777 = vunpack.c.l.b16 %v1677
        %v1778 = vunpack.c.l.b16 %v1678
        %v1779 = vunpack.c.l.b16 %v1679
        %v1780 = vunpack.c.l.b16 %v1680
        %v1781 = vunpack.c.l.b16 %v1681
        %v1782 = vunpack.c.l.b16 %v1682
        %v1783 = vunpack.c.l.b16 %v1683
        %v1784 = vunpack.c.l.b16 %v1684
        %v1785 = vunpack.c.l.b16 %v1685
        %v1786 = vunpack.c.l.b16 %v1686
        %v1787 = vpack.c.b16 %v1740, %v1739
        %v1788 = vpack.c.b16 %v1742, %v1741
        %v1789 = vpack.c.b16 %v1744, %v1743
        %v1790 = vpack.c.b16 %v1746, %v1745
        %v1791 = vpack.c.b16 %v1748, %v1747
        %v1792 = vpack.c.b16 %v1750, %v1749
        %v1793 = vpack.c.b16 %v1752, %v1751
        %v1794 = vpack.c.b16 %v1754, %v1753
        %v1795 = vpack.c.b16 %v1756, %v1755
        %v1796 = vpack.c.b16 %v1758, %v1757
        %v1797 = vpack.c.b16 %v1760, %v1759
        %v1798 = vpack.c.b16 %v1762, %v1761
        %v1799 = vpack.c.b16 %v1764, %v1763
        %v1800 = vpack.c.b16 %v1766, %v1765
        %v1801 = vpack.c.b16 %v1768, %v1767
        %v1802 = vpack.c.b16 %v1770, %v1769
        %v1803 = vpack.c.b16 %v1772, %v1771
        %v1804 = vpack.c.b16 %v1774, %v1773
        %v1805 = vpack.c.b16 %v1776, %v1775
        %v1806 = vpack.c.b16 %v1778, %v1777
        %v1807 = vpack.c.b16 %v1780, %v1779
        %v1808 = vpack.c.b16 %v1782, %v1781
        %v1809 = vpack.c.b16 %v1784, %v1783
        %v1810 = vpack.c.b16 %v1786, %v1785
        %1835 = vmatpush.bf16.msra.mxu0 %v1794
        %1836 = vmatpush.bf16.msra.mxu0 %v1793
        %1837 = vmatpush.bf16.msra.mxu0 %v1792
        %1838 = vmatpush.bf16.msra.mxu0 %v1791
        %1839 = vmatpush.bf16.msra.mxu0 %v1790
        %1840 = vmatpush.bf16.msra.mxu0 %v1789
        %1841 = vmatpush.bf16.msra.mxu0 %v1788
        %1842 = vmatpush.bf16.msra.mxu0 %v1787
        %1843 = vmatmul.bf16.gmra.mxu0 %v1636
        %v1844 = vpop.f32.mrf.mxu0
        %v1845 = vadd.f32 %v1689, %v1844
        %v1846 = vpop.f32.mrf.mxu0
        %v1847 = vadd.f32 %v1689, %v1846
        %1848 = vdwg.mxu0
        %1849 = vmatpush.bf16.msra.mxu0 %v1802
        %1850 = vmatpush.bf16.msra.mxu0 %v1801
        %1851 = vmatpush.bf16.msra.mxu0 %v1800
        %1852 = vmatpush.bf16.msra.mxu0 %v1799
        %1853 = vmatpush.bf16.msra.mxu0 %v1798
        %1854 = vmatpush.bf16.msra.mxu0 %v1797
        %1855 = vmatpush.bf16.msra.mxu0 %v1796
        %1856 = vmatpush.bf16.msra.mxu0 %v1795
        %1857 = vmatmul.bf16.gmra.mxu0 %v1637
        %v1858 = vpop.f32.mrf.mxu0
        %v1859 = vadd.f32 %v1845, %v1858
        %v1860 = vpop.f32.mrf.mxu0
        %v1861 = vadd.f32 %v1847, %v1860
        %1862 = vdwg.mxu0
        %1863 = vmatpush.bf16.msra.mxu0 %v1810
        %1864 = vmatpush.bf16.msra.mxu0 %v1809
        %1865 = vmatpush.bf16.msra.mxu0 %v1808
        %1866 = vmatpush.bf16.msra.mxu0 %v1807
        %1867 = vmatpush.bf16.msra.mxu0 %v1806
        %1868 = vmatpush.bf16.msra.mxu0 %v1805
        %1869 = vmatpush.bf16.msra.mxu0 %v1804
        %1870 = vmatpush.bf16.msra.mxu0 %v1803
        %1871 = vmatmul.bf16.gmra.mxu0 %v1638
        %v1872 = vpop.f32.mrf.mxu0
        %v1873 = vadd.f32 %v1859, %v1872
        %v1874 = vpop.f32.mrf.mxu0
        %v1875 = vadd.f32 %v1861, %v1874
        %1876 = vdwg.mxu0
        %v1877 = vmax.f32 %v1873, 0.0
        %v1878 = vmax.f32 %v1875, 0.0
        %v1881 = vrot.slane %v1877, 7
        %v1882 = vrot.slane %v1878, 7
        %v1883 = vsel %vm1357, %v1881, %v1882
        %1887 = vst [vmem:[#allocation6 + $0x10] sm:$0xfe] %v1881
        %1888 = vst [vmem:[#allocation6 + $0x28] sm:$0xff] %v1883
        %1889 = vst [vmem:[#allocation6 + $0x40] sm:$0x1] %v1882
        %v1890 = vld [vmem:[#allocation6] sm:$0xff]
        %v1891 = vld [vmem:[#allocation6 + $0x8] sm:$0xff]
        %v1892 = vld [vmem:[#allocation6 + $0x10] sm:$0xff]
        %v1893 = vld [vmem:[#allocation6 + $0x18] sm:$0xff]
        %v1894 = vld [vmem:[#allocation6 + $0x20] sm:$0xff]
        %v1895 = vld [vmem:[#allocation6 + $0x28] sm:$0xff]
        %v1896 = vld [vmem:[#allocation6] sm:$0xfe]
        %v1897 = vld [vmem:[#allocation6 + $0x8] sm:$0xfe]
        %v1898 = vld [vmem:[#allocation6 + $0x10] sm:$0xfe]
        %v1899 = vld [vmem:[#allocation6 + $0x30] sm:$0x1]
        %v1900 = vld [vmem:[#allocation6 + $0x38] sm:$0x1]
        %v1901 = vld [vmem:[#allocation6 + $0x40] sm:$0x1]
        %v1902 = vld [vmem:[#allocation6] sm:$0xfc]
        %v1903 = vld [vmem:[#allocation6 + $0x8] sm:$0xfc]
        %v1904 = vld [vmem:[#allocation6 + $0x10] sm:$0xfc]
        %v1905 = vld [vmem:[#allocation6 + $0x30] sm:$0x3]
        %v1906 = vld [vmem:[#allocation6 + $0x38] sm:$0x3]
        %v1907 = vld [vmem:[#allocation6 + $0x40] sm:$0x3]
        %vm1917 = vcmask 1046528
        %v1918 = vrot.slane %v1896, 1
        %v1919 = vrot.slane %v1893, 1
        %v1920 = vsel %vm1917, %v1918, %v1919
        %v1921 = vrot.slane %v1897, 1
        %v1922 = vrot.slane %v1894, 1
        %v1923 = vsel %vm1917, %v1921, %v1922
        %v1924 = vrot.slane %v1898, 1
        %v1925 = vrot.slane %v1895, 1
        %v1926 = vsel %vm1917, %v1924, %v1925
        %v1927 = vrot.slane %v1899, 1
        %v1928 = vsel %vm1917, %v1919, %v1927
        %v1929 = vrot.slane %v1900, 1
        %v1930 = vsel %vm1917, %v1922, %v1929
        %v1931 = vrot.slane %v1901, 1
        %v1932 = vsel %vm1917, %v1925, %v1931
        %vm1945 = vcmask 1045504
        %v1946 = vrot.slane %v1902, 2
        %v1947 = vrot.slane %v1893, 2
        %v1948 = vsel %vm1945, %v1946, %v1947
        %v1949 = vrot.slane %v1903, 2
        %v1950 = vrot.slane %v1894, 2
        %v1951 = vsel %vm1945, %v1949, %v1950
        %v1952 = vrot.slane %v1904, 2
        %v1953 = vrot.slane %v1895, 2
        %v1954 = vsel %vm1945, %v1952, %v1953
        %v1955 = vrot.slane %v1905, 2
        %v1956 = vsel %vm1945, %v1947, %v1955
        %v1957 = vrot.slane %v1906, 2
        %v1958 = vsel %vm1945, %v1950, %v1957
        %v1959 = vrot.slane %v1907, 2
        %v1960 = vsel %vm1945, %v1953, %v1959
        %v1967 = vpack.c.bf16 %v1893, %v1890
        %v1968 = vpack.c.bf16 %v1894, %v1891
        %v1969 = vpack.c.bf16 %v1895, %v1892
        %v1970 = vpack.c.bf16 %v1928, %v1920
        %v1971 = vpack.c.bf16 %v1930, %v1923
        %v1972 = vpack.c.bf16 %v1932, %v1926
        %v1973 = vpack.c.bf16 %v1956, %v1948
        %v1974 = vpack.c.bf16 %v1958, %v1951
        %v1975 = vpack.c.bf16 %v1960, %v1954
        %v1976 = vld [vmem:[#allocation18] sm:$0xf]
        %v1977 = vld [vmem:[#allocation18 + $0x4] sm:$0xf]
        %v1978 = vld [vmem:[#allocation18 + $0x8] sm:$0xf]
        %v1979 = vld [vmem:[#allocation18 + $0xc] sm:$0xf]
        %v1980 = vld [vmem:[#allocation18 + $0x10] sm:$0xf]
        %v1981 = vld [vmem:[#allocation18 + $0x14] sm:$0xf]
        %v1982 = vld [vmem:[#allocation18 + $0x18] sm:$0xf]
        %v1983 = vld [vmem:[#allocation18 + $0x1c] sm:$0xf]
        %v1984 = vld [vmem:[#allocation18 + $0x20] sm:$0xf]
        %v1985 = vld [vmem:[#allocation18 + $0x24] sm:$0xf]
        %v1986 = vld [vmem:[#allocation18 + $0x28] sm:$0xf]
        %v1987 = vld [vmem:[#allocation18 + $0x2c] sm:$0xf]
        %v1988 = vld [vmem:[#allocation18 + $0x30] sm:$0xf]
        %v1989 = vld [vmem:[#allocation18 + $0x34] sm:$0xf]
        %v1990 = vld [vmem:[#allocation18 + $0x38] sm:$0xf]
        %v1991 = vld [vmem:[#allocation18 + $0x3c] sm:$0xf]
        %v1992 = vld [vmem:[#allocation18 + $0x40] sm:$0xf]
        %v1993 = vld [vmem:[#allocation18 + $0x44] sm:$0xf]
        %v1994 = vld [vmem:[#allocation18 + $0x48] sm:$0xf]
        %v1995 = vld [vmem:[#allocation18 + $0x4c] sm:$0xf]
        %v1996 = vld [vmem:[#allocation18 + $0x50] sm:$0xf]
        %v1997 = vld [vmem:[#allocation18 + $0x54] sm:$0xf]
        %v1998 = vld [vmem:[#allocation18 + $0x58] sm:$0xf]
        %v1999 = vld [vmem:[#allocation18 + $0x5c] sm:$0xf]
        %v2000 = vld [vmem:[#allocation18 + $0x60] sm:$0xf]
        %v2001 = vld [vmem:[#allocation18 + $0x64] sm:$0xf]
        %v2002 = vld [vmem:[#allocation18 + $0x68] sm:$0xf]
        %v2003 = vld [vmem:[#allocation18 + $0x6c] sm:$0xf]
        %v2004 = vld [vmem:[#allocation18 + $0x70] sm:$0xf]
        %v2005 = vld [vmem:[#allocation18 + $0x74] sm:$0xf]
        %v2006 = vld [vmem:[#allocation18 + $0x78] sm:$0xf]
        %v2007 = vld [vmem:[#allocation18 + $0x7c] sm:$0xf]
        %v2008 = vld [vmem:[#allocation18 + $0x80] sm:$0xf]
        %v2009 = vld [vmem:[#allocation18 + $0x84] sm:$0xf]
        %v2010 = vld [vmem:[#allocation18 + $0x88] sm:$0xf]
        %v2011 = vld [vmem:[#allocation18 + $0x8c] sm:$0xf]
        %v2012 = vld [vmem:[#allocation18 + $0x90] sm:$0xf]
        %v2013 = vld [vmem:[#allocation18 + $0x94] sm:$0xf]
        %v2014 = vld [vmem:[#allocation18 + $0x98] sm:$0xf]
        %v2015 = vld [vmem:[#allocation18 + $0x9c] sm:$0xf]
        %v2016 = vld [vmem:[#allocation18 + $0xa0] sm:$0xf]
        %v2017 = vld [vmem:[#allocation18 + $0xa4] sm:$0xf]
        %v2018 = vld [vmem:[#allocation18 + $0xa8] sm:$0xf]
        %v2019 = vld [vmem:[#allocation18 + $0xac] sm:$0xf]
        %v2020 = vld [vmem:[#allocation18 + $0xb0] sm:$0xf]
        %v2021 = vld [vmem:[#allocation18 + $0xb4] sm:$0xf]
        %v2022 = vld [vmem:[#allocation18 + $0xb8] sm:$0xf]
        %v2023 = vld [vmem:[#allocation18 + $0xbc] sm:$0xf]
        %v2024 = vld [vmem:[#allocation18 + $0xc0] sm:$0xf]
        %v2025 = vld [vmem:[#allocation18 + $0xc4] sm:$0xf]
        %v2026 = vld [vmem:[#allocation18 + $0xc8] sm:$0xf]
        %v2027 = vld [vmem:[#allocation18 + $0xcc] sm:$0xf]
        %v2028 = vld [vmem:[#allocation18 + $0xd0] sm:$0xf]
        %v2029 = vld [vmem:[#allocation18 + $0xd4] sm:$0xf]
        %v2030 = vld [vmem:[#allocation18 + $0xd8] sm:$0xf]
        %v2031 = vld [vmem:[#allocation18 + $0xdc] sm:$0xf]
        %v2032 = vld [vmem:[#allocation18 + $0xe0] sm:$0xf]
        %v2033 = vld [vmem:[#allocation18 + $0xe4] sm:$0xf]
        %v2034 = vld [vmem:[#allocation18 + $0xe8] sm:$0xf]
        %v2035 = vld [vmem:[#allocation18 + $0xec] sm:$0xf]
        %v2036 = vld [vmem:[#allocation18 + $0xf0] sm:$0xf]
        %v2037 = vld [vmem:[#allocation18 + $0xf4] sm:$0xf]
        %v2038 = vld [vmem:[#allocation18 + $0xf8] sm:$0xf]
        %v2039 = vld [vmem:[#allocation18 + $0xfc] sm:$0xf]
        %v2040 = vld [vmem:[#allocation18 + $0x100] sm:$0xf]
        %v2041 = vld [vmem:[#allocation18 + $0x104] sm:$0xf]
        %v2042 = vld [vmem:[#allocation18 + $0x108] sm:$0xf]
        %v2043 = vld [vmem:[#allocation18 + $0x10c] sm:$0xf]
        %v2044 = vld [vmem:[#allocation18 + $0x110] sm:$0xf]
        %v2045 = vld [vmem:[#allocation18 + $0x114] sm:$0xf]
        %v2046 = vld [vmem:[#allocation18 + $0x118] sm:$0xf]
        %v2047 = vld [vmem:[#allocation18 + $0x11c] sm:$0xf]
        %v2048 = vld [vmem:[#allocation18 + $0x120] sm:$0xf]
        %v2049 = vld [vmem:[#allocation18 + $0x124] sm:$0xf]
        %v2050 = vld [vmem:[#allocation18 + $0x128] sm:$0xf]
        %v2051 = vld [vmem:[#allocation18 + $0x12c] sm:$0xf]
        %v2052 = vld [vmem:[#allocation18 + $0x130] sm:$0xf]
        %v2053 = vld [vmem:[#allocation18 + $0x134] sm:$0xf]
        %v2054 = vld [vmem:[#allocation18 + $0x138] sm:$0xf]
        %v2055 = vld [vmem:[#allocation18 + $0x13c] sm:$0xf]
        %v2056 = vld [vmem:[#allocation18 + $0x140] sm:$0xf]
        %v2057 = vld [vmem:[#allocation18 + $0x144] sm:$0xf]
        %v2058 = vld [vmem:[#allocation18 + $0x148] sm:$0xf]
        %v2059 = vld [vmem:[#allocation18 + $0x14c] sm:$0xf]
        %v2060 = vld [vmem:[#allocation18 + $0x150] sm:$0xf]
        %v2061 = vld [vmem:[#allocation18 + $0x154] sm:$0xf]
        %v2062 = vld [vmem:[#allocation18 + $0x158] sm:$0xf]
        %v2063 = vld [vmem:[#allocation18 + $0x15c] sm:$0xf]
        %v2064 = vld [vmem:[#allocation18 + $0x160] sm:$0xf]
        %v2065 = vld [vmem:[#allocation18 + $0x164] sm:$0xf]
        %v2066 = vld [vmem:[#allocation18 + $0x168] sm:$0xf]
        %v2067 = vld [vmem:[#allocation18 + $0x16c] sm:$0xf]
        %v2068 = vld [vmem:[#allocation18 + $0x170] sm:$0xf]
        %v2069 = vld [vmem:[#allocation18 + $0x174] sm:$0xf]
        %v2070 = vld [vmem:[#allocation18 + $0x178] sm:$0xf]
        %v2071 = vld [vmem:[#allocation18 + $0x17c] sm:$0xf]
        %v2072 = vld [vmem:[#allocation18 + $0x180] sm:$0xf]
        %v2073 = vld [vmem:[#allocation18 + $0x184] sm:$0xf]
        %v2074 = vld [vmem:[#allocation18 + $0x188] sm:$0xf]
        %v2075 = vld [vmem:[#allocation18 + $0x18c] sm:$0xf]
        %v2076 = vld [vmem:[#allocation18 + $0x190] sm:$0xf]
        %v2077 = vld [vmem:[#allocation18 + $0x194] sm:$0xf]
        %v2078 = vld [vmem:[#allocation18 + $0x198] sm:$0xf]
        %v2079 = vld [vmem:[#allocation18 + $0x19c] sm:$0xf]
        %v2080 = vld [vmem:[#allocation18 + $0x1a0] sm:$0xf]
        %v2081 = vld [vmem:[#allocation18 + $0x1a4] sm:$0xf]
        %v2082 = vld [vmem:[#allocation18 + $0x1a8] sm:$0xf]
        %v2083 = vld [vmem:[#allocation18 + $0x1ac] sm:$0xf]
        %v2084 = vld [vmem:[#allocation18 + $0x1b0] sm:$0xf]
        %v2085 = vld [vmem:[#allocation18 + $0x1b4] sm:$0xf]
        %v2086 = vld [vmem:[#allocation18 + $0x1b8] sm:$0xf]
        %v2087 = vld [vmem:[#allocation18 + $0x1bc] sm:$0xf]
        %v2088 = vld [vmem:[#allocation18 + $0x1c0] sm:$0xf]
        %v2089 = vld [vmem:[#allocation18 + $0x1c4] sm:$0xf]
        %v2090 = vld [vmem:[#allocation18 + $0x1c8] sm:$0xf]
        %v2091 = vld [vmem:[#allocation18 + $0x1cc] sm:$0xf]
        %v2092 = vld [vmem:[#allocation18 + $0x1d0] sm:$0xf]
        %v2093 = vld [vmem:[#allocation18 + $0x1d4] sm:$0xf]
        %v2094 = vld [vmem:[#allocation18 + $0x1d8] sm:$0xf]
        %v2095 = vld [vmem:[#allocation18 + $0x1dc] sm:$0xf]
        %v2096 = vld [vmem:[#allocation18 + $0x1e0] sm:$0xf]
        %v2097 = vld [vmem:[#allocation18 + $0x1e4] sm:$0xf]
        %v2098 = vld [vmem:[#allocation18 + $0x1e8] sm:$0xf]
        %v2099 = vld [vmem:[#allocation18 + $0x1ec] sm:$0xf]
        %v2100 = vld [vmem:[#allocation18 + $0x1f0] sm:$0xf]
        %v2101 = vld [vmem:[#allocation18 + $0x1f4] sm:$0xf]
        %v2102 = vld [vmem:[#allocation18 + $0x1f8] sm:$0xf]
        %v2103 = vld [vmem:[#allocation18 + $0x1fc] sm:$0xf]
        %v2104 = vld [vmem:[#allocation18 + $0x200] sm:$0xf]
        %v2105 = vld [vmem:[#allocation18 + $0x204] sm:$0xf]
        %v2106 = vld [vmem:[#allocation18 + $0x208] sm:$0xf]
        %v2107 = vld [vmem:[#allocation18 + $0x20c] sm:$0xf]
        %v2108 = vld [vmem:[#allocation18 + $0x210] sm:$0xf]
        %v2109 = vld [vmem:[#allocation18 + $0x214] sm:$0xf]
        %v2110 = vld [vmem:[#allocation18 + $0x218] sm:$0xf]
        %v2111 = vld [vmem:[#allocation18 + $0x21c] sm:$0xf]
        %v2112 = vld [vmem:[#allocation18 + $0x220] sm:$0xf]
        %v2113 = vld [vmem:[#allocation18 + $0x224] sm:$0xf]
        %v2114 = vld [vmem:[#allocation18 + $0x228] sm:$0xf]
        %v2115 = vld [vmem:[#allocation18 + $0x22c] sm:$0xf]
        %v2116 = vld [vmem:[#allocation18 + $0x230] sm:$0xf]
        %v2117 = vld [vmem:[#allocation18 + $0x234] sm:$0xf]
        %v2118 = vld [vmem:[#allocation18 + $0x238] sm:$0xf]
        %v2119 = vld [vmem:[#allocation18 + $0x23c] sm:$0xf]
        %v2120 = vld [vmem:[%s10] sm:$0x1]
        %v2122 = vperm.slane %v2120, 0
        %v2268 = vunpack.c.l.b16 %v1976
        %v2269 = vunpack.c.l.b16 %v1977
        %v2270 = vunpack.c.l.b16 %v1978
        %v2271 = vunpack.c.l.b16 %v1979
        %v2272 = vunpack.c.l.b16 %v1980
        %v2273 = vunpack.c.l.b16 %v1981
        %v2274 = vunpack.c.l.b16 %v1982
        %v2275 = vunpack.c.l.b16 %v1983
        %v2276 = vunpack.c.l.b16 %v1984
        %v2277 = vunpack.c.l.b16 %v1985
        %v2278 = vunpack.c.l.b16 %v1986
        %v2279 = vunpack.c.l.b16 %v1987
        %v2280 = vunpack.c.l.b16 %v1988
        %v2281 = vunpack.c.l.b16 %v1989
        %v2282 = vunpack.c.l.b16 %v1990
        %v2283 = vunpack.c.l.b16 %v1991
        %v2284 = vunpack.c.l.b16 %v1992
        %v2285 = vunpack.c.l.b16 %v1993
        %v2286 = vunpack.c.l.b16 %v1994
        %v2287 = vunpack.c.l.b16 %v1995
        %v2288 = vunpack.c.l.b16 %v1996
        %v2289 = vunpack.c.l.b16 %v1997
        %v2290 = vunpack.c.l.b16 %v1998
        %v2291 = vunpack.c.l.b16 %v1999
        %v2292 = vunpack.c.l.b16 %v2000
        %v2293 = vunpack.c.l.b16 %v2001
        %v2294 = vunpack.c.l.b16 %v2002
        %v2295 = vunpack.c.l.b16 %v2003
        %v2296 = vunpack.c.l.b16 %v2004
        %v2297 = vunpack.c.l.b16 %v2005
        %v2298 = vunpack.c.l.b16 %v2006
        %v2299 = vunpack.c.l.b16 %v2007
        %v2300 = vunpack.c.l.b16 %v2008
        %v2301 = vunpack.c.l.b16 %v2009
        %v2302 = vunpack.c.l.b16 %v2010
        %v2303 = vunpack.c.l.b16 %v2011
        %v2304 = vunpack.c.l.b16 %v2012
        %v2305 = vunpack.c.l.b16 %v2013
        %v2306 = vunpack.c.l.b16 %v2014
        %v2307 = vunpack.c.l.b16 %v2015
        %v2308 = vunpack.c.l.b16 %v2016
        %v2309 = vunpack.c.l.b16 %v2017
        %v2310 = vunpack.c.l.b16 %v2018
        %v2311 = vunpack.c.l.b16 %v2019
        %v2312 = vunpack.c.l.b16 %v2020
        %v2313 = vunpack.c.l.b16 %v2021
        %v2314 = vunpack.c.l.b16 %v2022
        %v2315 = vunpack.c.l.b16 %v2023
        %v2316 = vunpack.c.l.b16 %v2024
        %v2317 = vunpack.c.l.b16 %v2025
        %v2318 = vunpack.c.l.b16 %v2026
        %v2319 = vunpack.c.l.b16 %v2027
        %v2320 = vunpack.c.l.b16 %v2028
        %v2321 = vunpack.c.l.b16 %v2029
        %v2322 = vunpack.c.l.b16 %v2030
        %v2323 = vunpack.c.l.b16 %v2031
        %v2324 = vunpack.c.l.b16 %v2032
        %v2325 = vunpack.c.l.b16 %v2033
        %v2326 = vunpack.c.l.b16 %v2034
        %v2327 = vunpack.c.l.b16 %v2035
        %v2328 = vunpack.c.l.b16 %v2036
        %v2329 = vunpack.c.l.b16 %v2037
        %v2330 = vunpack.c.l.b16 %v2038
        %v2331 = vunpack.c.l.b16 %v2039
        %v2332 = vunpack.c.l.b16 %v2040
        %v2333 = vunpack.c.l.b16 %v2041
        %v2334 = vunpack.c.l.b16 %v2042
        %v2335 = vunpack.c.l.b16 %v2043
        %v2336 = vunpack.c.l.b16 %v2044
        %v2337 = vunpack.c.l.b16 %v2045
        %v2338 = vunpack.c.l.b16 %v2046
        %v2339 = vunpack.c.l.b16 %v2047
        %v2340 = vunpack.c.l.b16 %v2048
        %v2341 = vunpack.c.l.b16 %v2049
        %v2342 = vunpack.c.l.b16 %v2050
        %v2343 = vunpack.c.l.b16 %v2051
        %v2344 = vunpack.c.l.b16 %v2052
        %v2345 = vunpack.c.l.b16 %v2053
        %v2346 = vunpack.c.l.b16 %v2054
        %v2347 = vunpack.c.l.b16 %v2055
        %v2348 = vunpack.c.l.b16 %v2056
        %v2349 = vunpack.c.l.b16 %v2057
        %v2350 = vunpack.c.l.b16 %v2058
        %v2351 = vunpack.c.l.b16 %v2059
        %v2352 = vunpack.c.l.b16 %v2060
        %v2353 = vunpack.c.l.b16 %v2061
        %v2354 = vunpack.c.l.b16 %v2062
        %v2355 = vunpack.c.l.b16 %v2063
        %v2356 = vunpack.c.l.b16 %v2064
        %v2357 = vunpack.c.l.b16 %v2065
        %v2358 = vunpack.c.l.b16 %v2066
        %v2359 = vunpack.c.l.b16 %v2067
        %v2360 = vunpack.c.l.b16 %v2068
        %v2361 = vunpack.c.l.b16 %v2069
        %v2362 = vunpack.c.l.b16 %v2070
        %v2363 = vunpack.c.l.b16 %v2071
        %v2364 = vunpack.c.l.b16 %v2072
        %v2365 = vunpack.c.l.b16 %v2073
        %v2366 = vunpack.c.l.b16 %v2074
        %v2367 = vunpack.c.l.b16 %v2075
        %v2368 = vunpack.c.l.b16 %v2076
        %v2369 = vunpack.c.l.b16 %v2077
        %v2370 = vunpack.c.l.b16 %v2078
        %v2371 = vunpack.c.l.b16 %v2079
        %v2372 = vunpack.c.l.b16 %v2080
        %v2373 = vunpack.c.l.b16 %v2081
        %v2374 = vunpack.c.l.b16 %v2082
        %v2375 = vunpack.c.l.b16 %v2083
        %v2376 = vunpack.c.l.b16 %v2084
        %v2377 = vunpack.c.l.b16 %v2085
        %v2378 = vunpack.c.l.b16 %v2086
        %v2379 = vunpack.c.l.b16 %v2087
        %v2380 = vunpack.c.l.b16 %v2088
        %v2381 = vunpack.c.l.b16 %v2089
        %v2382 = vunpack.c.l.b16 %v2090
        %v2383 = vunpack.c.l.b16 %v2091
        %v2384 = vunpack.c.l.b16 %v2092
        %v2385 = vunpack.c.l.b16 %v2093
        %v2386 = vunpack.c.l.b16 %v2094
        %v2387 = vunpack.c.l.b16 %v2095
        %v2388 = vunpack.c.l.b16 %v2096
        %v2389 = vunpack.c.l.b16 %v2097
        %v2390 = vunpack.c.l.b16 %v2098
        %v2391 = vunpack.c.l.b16 %v2099
        %v2392 = vunpack.c.l.b16 %v2100
        %v2393 = vunpack.c.l.b16 %v2101
        %v2394 = vunpack.c.l.b16 %v2102
        %v2395 = vunpack.c.l.b16 %v2103
        %v2396 = vunpack.c.l.b16 %v2104
        %v2397 = vunpack.c.l.b16 %v2105
        %v2398 = vunpack.c.l.b16 %v2106
        %v2399 = vunpack.c.l.b16 %v2107
        %v2400 = vunpack.c.l.b16 %v2108
        %v2401 = vunpack.c.l.b16 %v2109
        %v2402 = vunpack.c.l.b16 %v2110
        %v2403 = vunpack.c.l.b16 %v2111
        %v2404 = vunpack.c.l.b16 %v2112
        %v2405 = vunpack.c.l.b16 %v2113
        %v2406 = vunpack.c.l.b16 %v2114
        %v2407 = vunpack.c.l.b16 %v2115
        %v2408 = vunpack.c.l.b16 %v2116
        %v2409 = vunpack.c.l.b16 %v2117
        %v2410 = vunpack.c.l.b16 %v2118
        %v2411 = vunpack.c.l.b16 %v2119
        %v2412 = vpack.c.b16 %v2269, %v2268
        %v2413 = vpack.c.b16 %v2271, %v2270
        %v2414 = vpack.c.b16 %v2273, %v2272
        %v2415 = vpack.c.b16 %v2275, %v2274
        %v2416 = vpack.c.b16 %v2277, %v2276
        %v2417 = vpack.c.b16 %v2279, %v2278
        %v2418 = vpack.c.b16 %v2281, %v2280
        %v2419 = vpack.c.b16 %v2283, %v2282
        %v2420 = vpack.c.b16 %v2285, %v2284
        %v2421 = vpack.c.b16 %v2287, %v2286
        %v2422 = vpack.c.b16 %v2289, %v2288
        %v2423 = vpack.c.b16 %v2291, %v2290
        %v2424 = vpack.c.b16 %v2293, %v2292
        %v2425 = vpack.c.b16 %v2295, %v2294
        %v2426 = vpack.c.b16 %v2297, %v2296
        %v2427 = vpack.c.b16 %v2299, %v2298
        %v2428 = vpack.c.b16 %v2301, %v2300
        %v2429 = vpack.c.b16 %v2303, %v2302
        %v2430 = vpack.c.b16 %v2305, %v2304
        %v2431 = vpack.c.b16 %v2307, %v2306
        %v2432 = vpack.c.b16 %v2309, %v2308
        %v2433 = vpack.c.b16 %v2311, %v2310
        %v2434 = vpack.c.b16 %v2313, %v2312
        %v2435 = vpack.c.b16 %v2315, %v2314
        %v2436 = vpack.c.b16 %v2317, %v2316
        %v2437 = vpack.c.b16 %v2319, %v2318
        %v2438 = vpack.c.b16 %v2321, %v2320
        %v2439 = vpack.c.b16 %v2323, %v2322
        %v2440 = vpack.c.b16 %v2325, %v2324
        %v2441 = vpack.c.b16 %v2327, %v2326
        %v2442 = vpack.c.b16 %v2329, %v2328
        %v2443 = vpack.c.b16 %v2331, %v2330
        %v2444 = vpack.c.b16 %v2333, %v2332
        %v2445 = vpack.c.b16 %v2335, %v2334
        %v2446 = vpack.c.b16 %v2337, %v2336
        %v2447 = vpack.c.b16 %v2339, %v2338
        %v2448 = vpack.c.b16 %v2341, %v2340
        %v2449 = vpack.c.b16 %v2343, %v2342
        %v2450 = vpack.c.b16 %v2345, %v2344
        %v2451 = vpack.c.b16 %v2347, %v2346
        %v2452 = vpack.c.b16 %v2349, %v2348
        %v2453 = vpack.c.b16 %v2351, %v2350
        %v2454 = vpack.c.b16 %v2353, %v2352
        %v2455 = vpack.c.b16 %v2355, %v2354
        %v2456 = vpack.c.b16 %v2357, %v2356
        %v2457 = vpack.c.b16 %v2359, %v2358
        %v2458 = vpack.c.b16 %v2361, %v2360
        %v2459 = vpack.c.b16 %v2363, %v2362
        %v2460 = vpack.c.b16 %v2365, %v2364
        %v2461 = vpack.c.b16 %v2367, %v2366
        %v2462 = vpack.c.b16 %v2369, %v2368
        %v2463 = vpack.c.b16 %v2371, %v2370
        %v2464 = vpack.c.b16 %v2373, %v2372
        %v2465 = vpack.c.b16 %v2375, %v2374
        %v2466 = vpack.c.b16 %v2377, %v2376
        %v2467 = vpack.c.b16 %v2379, %v2378
        %v2468 = vpack.c.b16 %v2381, %v2380
        %v2469 = vpack.c.b16 %v2383, %v2382
        %v2470 = vpack.c.b16 %v2385, %v2384
        %v2471 = vpack.c.b16 %v2387, %v2386
        %v2472 = vpack.c.b16 %v2389, %v2388
        %v2473 = vpack.c.b16 %v2391, %v2390
        %v2474 = vpack.c.b16 %v2393, %v2392
        %v2475 = vpack.c.b16 %v2395, %v2394
        %v2476 = vpack.c.b16 %v2397, %v2396
        %v2477 = vpack.c.b16 %v2399, %v2398
        %v2478 = vpack.c.b16 %v2401, %v2400
        %v2479 = vpack.c.b16 %v2403, %v2402
        %v2480 = vpack.c.b16 %v2405, %v2404
        %v2481 = vpack.c.b16 %v2407, %v2406
        %v2482 = vpack.c.b16 %v2409, %v2408
        %v2483 = vpack.c.b16 %v2411, %v2410
        %2556 = vmatpush.bf16.msra.mxu0 %v2419
        %2557 = vmatpush.bf16.msra.mxu0 %v2418
        %2558 = vmatpush.bf16.msra.mxu0 %v2417
        %2559 = vmatpush.bf16.msra.mxu0 %v2416
        %2560 = vmatpush.bf16.msra.mxu0 %v2415
        %2561 = vmatpush.bf16.msra.mxu0 %v2414
        %2562 = vmatpush.bf16.msra.mxu0 %v2413
        %2563 = vmatpush.bf16.msra.mxu0 %v2412
        %2564 = vmatmul.bf16.gmra.mxu0 %v1967
        %v2565 = vpop.f32.mrf.mxu0
        %v2566 = vadd.f32 %v2122, %v2565
        %v2567 = vpop.f32.mrf.mxu0
        %v2568 = vadd.f32 %v2122, %v2567
        %2569 = vdwg.mxu0
        %2570 = vmatpush.bf16.msra.mxu0 %v2427
        %2571 = vmatpush.bf16.msra.mxu0 %v2426
        %2572 = vmatpush.bf16.msra.mxu0 %v2425
        %2573 = vmatpush.bf16.msra.mxu0 %v2424
        %2574 = vmatpush.bf16.msra.mxu0 %v2423
        %2575 = vmatpush.bf16.msra.mxu0 %v2422
        %2576 = vmatpush.bf16.msra.mxu0 %v2421
        %2577 = vmatpush.bf16.msra.mxu0 %v2420
        %2578 = vmatmul.bf16.gmra.mxu0 %v1968
        %v2579 = vpop.f32.mrf.mxu0
        %v2580 = vadd.f32 %v2566, %v2579
        %v2581 = vpop.f32.mrf.mxu0
        %v2582 = vadd.f32 %v2568, %v2581
        %2583 = vdwg.mxu0
        %2584 = vmatpush.bf16.msra.mxu0 %v2435
        %2585 = vmatpush.bf16.msra.mxu0 %v2434
        %2586 = vmatpush.bf16.msra.mxu0 %v2433
        %2587 = vmatpush.bf16.msra.mxu0 %v2432
        %2588 = vmatpush.bf16.msra.mxu0 %v2431
        %2589 = vmatpush.bf16.msra.mxu0 %v2430
        %2590 = vmatpush.bf16.msra.mxu0 %v2429
        %2591 = vmatpush.bf16.msra.mxu0 %v2428
        %2592 = vmatmul.bf16.gmra.mxu0 %v1969
        %v2593 = vpop.f32.mrf.mxu0
        %v2594 = vadd.f32 %v2580, %v2593
        %v2595 = vpop.f32.mrf.mxu0
        %v2596 = vadd.f32 %v2582, %v2595
        %2597 = vdwg.mxu0
        %2598 = vmatpush.bf16.msra.mxu0 %v2443
        %2599 = vmatpush.bf16.msra.mxu0 %v2442
        %2600 = vmatpush.bf16.msra.mxu0 %v2441
        %2601 = vmatpush.bf16.msra.mxu0 %v2440
        %2602 = vmatpush.bf16.msra.mxu0 %v2439
        %2603 = vmatpush.bf16.msra.mxu0 %v2438
        %2604 = vmatpush.bf16.msra.mxu0 %v2437
        %2605 = vmatpush.bf16.msra.mxu0 %v2436
        %2606 = vmatmul.bf16.gmra.mxu0 %v1970
        %v2607 = vpop.f32.mrf.mxu0
        %v2608 = vadd.f32 %v2594, %v2607
        %v2609 = vpop.f32.mrf.mxu0
        %v2610 = vadd.f32 %v2596, %v2609
        %2611 = vdwg.mxu0
        %2612 = vmatpush.bf16.msra.mxu0 %v2451
        %2613 = vmatpush.bf16.msra.mxu0 %v2450
        %2614 = vmatpush.bf16.msra.mxu0 %v2449
        %2615 = vmatpush.bf16.msra.mxu0 %v2448
        %2616 = vmatpush.bf16.msra.mxu0 %v2447
        %2617 = vmatpush.bf16.msra.mxu0 %v2446
        %2618 = vmatpush.bf16.msra.mxu0 %v2445
        %2619 = vmatpush.bf16.msra.mxu0 %v2444
        %2620 = vmatmul.bf16.gmra.mxu0 %v1971
        %v2621 = vpop.f32.mrf.mxu0
        %v2622 = vadd.f32 %v2608, %v2621
        %v2623 = vpop.f32.mrf.mxu0
        %v2624 = vadd.f32 %v2610, %v2623
        %2625 = vdwg.mxu0
        %2626 = vmatpush.bf16.msra.mxu0 %v2459
        %2627 = vmatpush.bf16.msra.mxu0 %v2458
        %2628 = vmatpush.bf16.msra.mxu0 %v2457
        %2629 = vmatpush.bf16.msra.mxu0 %v2456
        %2630 = vmatpush.bf16.msra.mxu0 %v2455
        %2631 = vmatpush.bf16.msra.mxu0 %v2454
        %2632 = vmatpush.bf16.msra.mxu0 %v2453
        %2633 = vmatpush.bf16.msra.mxu0 %v2452
        %2634 = vmatmul.bf16.gmra.mxu0 %v1972
        %v2635 = vpop.f32.mrf.mxu0
        %v2636 = vadd.f32 %v2622, %v2635
        %v2637 = vpop.f32.mrf.mxu0
        %v2638 = vadd.f32 %v2624, %v2637
        %2639 = vdwg.mxu0
        %2640 = vmatpush.bf16.msra.mxu0 %v2467
        %2641 = vmatpush.bf16.msra.mxu0 %v2466
        %2642 = vmatpush.bf16.msra.mxu0 %v2465
        %2643 = vmatpush.bf16.msra.mxu0 %v2464
        %2644 = vmatpush.bf16.msra.mxu0 %v2463
        %2645 = vmatpush.bf16.msra.mxu0 %v2462
        %2646 = vmatpush.bf16.msra.mxu0 %v2461
        %2647 = vmatpush.bf16.msra.mxu0 %v2460
        %2648 = vmatmul.bf16.gmra.mxu0 %v1973
        %v2649 = vpop.f32.mrf.mxu0
        %v2650 = vadd.f32 %v2636, %v2649
        %v2651 = vpop.f32.mrf.mxu0
        %v2652 = vadd.f32 %v2638, %v2651
        %2653 = vdwg.mxu0
        %2654 = vmatpush.bf16.msra.mxu0 %v2475
        %2655 = vmatpush.bf16.msra.mxu0 %v2474
        %2656 = vmatpush.bf16.msra.mxu0 %v2473
        %2657 = vmatpush.bf16.msra.mxu0 %v2472
        %2658 = vmatpush.bf16.msra.mxu0 %v2471
        %2659 = vmatpush.bf16.msra.mxu0 %v2470
        %2660 = vmatpush.bf16.msra.mxu0 %v2469
        %2661 = vmatpush.bf16.msra.mxu0 %v2468
        %2662 = vmatmul.bf16.gmra.mxu0 %v1974
        %v2663 = vpop.f32.mrf.mxu0
        %v2664 = vadd.f32 %v2650, %v2663
        %v2665 = vpop.f32.mrf.mxu0
        %v2666 = vadd.f32 %v2652, %v2665
        %2667 = vdwg.mxu0
        %2668 = vmatpush.bf16.msra.mxu0 %v2483
        %2669 = vmatpush.bf16.msra.mxu0 %v2482
        %2670 = vmatpush.bf16.msra.mxu0 %v2481
        %2671 = vmatpush.bf16.msra.mxu0 %v2480
        %2672 = vmatpush.bf16.msra.mxu0 %v2479
        %2673 = vmatpush.bf16.msra.mxu0 %v2478
        %2674 = vmatpush.bf16.msra.mxu0 %v2477
        %2675 = vmatpush.bf16.msra.mxu0 %v2476
        %2676 = vmatmul.bf16.gmra.mxu0 %v1975
        %v2677 = vpop.f32.mrf.mxu0
        %v2678 = vadd.f32 %v2664, %v2677
        %v2679 = vpop.f32.mrf.mxu0
        %v2680 = vadd.f32 %v2666, %v2679
        %2681 = vdwg.mxu0
        %v2682 = vmax.f32 %v2678, 0.0
        %v2683 = vmax.f32 %v2680, 0.0
        %2684 = vst [vmem:[%s503] sm:$0xff] %v2682
        %2685 = vst [vmem:[%s503 + $0x8] sm:$0xff] %v2683
        %s2686 = sand.u32 %s275, 1
        %s2687 = scalar_lea.sflag [#allocation9], %s2686
        %s2688 = sand.u32 %s275, 1
        %s2689 = smul.addr %s2688, 16
        %s2690 = scalar_lea.vmem [#allocation19], %s2689
        // Predicated region
        $region93: #{tpu_custom_call.1} parent=63 // pred_check
          %p2691 = pneg %p285
        $region94: #{tpu_custom_call.1} parent=63 // pred_check_branch
          %2693 = sbr.rel (%p2691) target = $region96
        $region95: #{tpu_custom_call.1} parent=63 // pred_region
          %2695 = vsyncadd %s2687, 0
          %s2696 = smul.addr %s31, 2
          %s2697 = smul.addr %s2696, 8
          %s2698 = scalar_lea.hbm %s11, %s2697
          %s2699 = sshll.u32 %s2690, 4
          %s2700 = int_to_ptr.vmem [resolvable:$true] %s2699
          %s2701 = sshll.u32 %s2698, 4
          %s2702 = int_to_ptr.hbm [resolvable:$true] %s2701
          %2707 = dma.vmem_to_hbm [thread:$0]  %s2700, 256, %s2702, %s2687, 128, 128, 8
        $region96: #{tpu_custom_call.1} parent=63 // pred_fallthru
          _
      $region64: #{tpu_custom_call.1} parent=5 // pred_fallthru
        _
      %p2708 = scmp.le.s32.totalorder 2, %s26
      // Predicated region
      $region97: #{tpu_custom_call.1} parent=5 // pred_check
        %p2709 = pneg %p2708
      $region98: #{tpu_custom_call.1} parent=5 // pred_check_branch
        %2711 = sbr.rel (%p2709) target = $region100
      $region99: #{tpu_custom_call.1} parent=5 // pred_region
        %s2712 = ssub.s32 %s26, 2
        // Predicated region
        $region101: #{tpu_custom_call.1} parent=99 // pred_check
          %p2713 = pneg %p291
        $region102: #{tpu_custom_call.1} parent=99 // pred_check_branch
          %2715 = sbr.rel (%p2713) target = $region104
        $region103: #{tpu_custom_call.1} parent=99 // pred_region
          %s2716 = sand.u32 %s276, 1
          %s2717 = scalar_lea.sflag [#allocation9], %s2716
          %s2718 = sand.u32 %s276, 1
          %s2719 = smul.addr %s2718, 16
          %s2720 = scalar_lea.vmem [#allocation19], %s2719
          %2722 = dma.done %s2717, 256
        $region104: #{tpu_custom_call.1} parent=99 // pred_fallthru
          _
      $region100: #{tpu_custom_call.1} parent=5 // pred_fallthru
        _
    $region6: #{tpu_custom_call.1} parent=1 // loop_footer
      %s30 = sadd.s32 1, %s26
    $region7: #{tpu_custom_call.1} parent=1 // loop_footer_branch
      %25 = sbr.rel target = $region3
    $region8: #{tpu_custom_call.1} parent=1 // loop_exit
      _
    %2723 = vsyncpa [#allocation8], 1
    %s2724 = scalar_lea.sflag [#allocation8], 1
    %2725 = vsyncpa %s2724, 1
    %2726 = vsyncpa [#allocation11], 1
    %2727 = vsyncpa [#allocation14], 1
    %2728 = vsyncpa [#allocation17], 1
    %2729 = vsyncpa [#allocation9], 1
    %s2730 = scalar_lea.sflag [#allocation9], 1
    %2731 = vsyncpa %s2730, 1

</llo_original>
